<compile_context>
chip_gen: v6e
topology: v6e:2x2x1
jax: 0.10.0
libtpu: 0.0.40
codegen_flags: <defaults>
</compile_context>

<pallas_src>
import jax
import jax.numpy as jnp
from jax import lax
from jax.experimental import pallas as pl
from jax.experimental.pallas import tpu as pltpu


# ---------------------------------------------------------------------------
# Kernels
# ---------------------------------------------------------------------------

def _mm_bias_relu_nhwc_kernel(p_ref, w_ref, b_ref, o_ref):
    # p_ref: (tile_m, Kdim) bf16, w_ref: (Kdim, Cout) bf16, b_ref: (1, Cout) f32
    acc = jnp.dot(p_ref[...], w_ref[...], preferred_element_type=jnp.float32)
    acc = acc + b_ref[...]                       # bias broadcast over rows (f32)
    o_ref[...] = jnp.maximum(acc, 0.0).astype(o_ref.dtype)


def _mm_bias_relu_nchw_kernel(p_ref, w_ref, b_ref, o_ref):
    # p_ref: (OHW, Kdim) bf16, w_ref: (Cout, Kdim) bf16, b_ref: (Cout, 1) f32
    # W @ P^T computed directly (contract last dims of both operands) so the
    # kernel writes the NCHW-ordered (Cout, OHW) block with no wrapper transpose.
    acc = lax.dot_general(
        w_ref[...], p_ref[...],
        dimension_numbers=(((1,), (1,)), ((), ())),
        preferred_element_type=jnp.float32)      # (Cout, OHW)
    acc = acc + b_ref[...]                       # bias broadcast over lanes (f32)
    o_ref[...] = jnp.maximum(acc, 0.0).astype(o_ref.dtype)


# ---------------------------------------------------------------------------
# Tiling helpers
# ---------------------------------------------------------------------------

def _ceil_to(a, b):
    return -(-a // b) * b


def _default_num_core_tiles():
    """2 only when the device exposes >1 TensorCore (v7x); else 1 (v5e/v6e)."""
    try:
        return 2 if int(getattr(jax.devices()[0], "num_cores", 1)) >= 2 else 1
    except Exception:
        return 1


def _tiling(M, *, max_tile_rows=4096, row_align=16, min_tiles=1):
    """Pick (n_tiles, tile_m, padded_M) for the flat (channels_last) path.

    Single tile whenever it fits (one DMA in, one matmul pass, one DMA out);
    when splitting, keep the tile count a multiple of `min_tiles` so a dual-TC
    chip gets an even 'parallel' split. Rows 16-aligned for bf16 sublane packing.
    """
    step = max(1, min_tiles)
    n_tiles = step
    while -(-M // n_tiles) > max_tile_rows:
        n_tiles += step
    tile_m = _ceil_to(-(-M // n_tiles), row_align)
    return n_tiles, tile_m, n_tiles * tile_m


# ---------------------------------------------------------------------------
# Parameter prep (hoist out of the per-call forward; do this once)
# ---------------------------------------------------------------------------

def prepare_conv_params(weight, bias, *, channels_last=False):
    """weight: (Cout, Cin, K, K); bias: (Cout,) -> kernel-ready (w, b)."""
    Cout, Cin, K, _ = weight.shape
    Kdim = Cin * K * K
    if channels_last:
        w = weight.reshape(Cout, Kdim).T.astype(jnp.bfloat16)   # (Kdim, Cout)
        b = bias.reshape(1, Cout).astype(jnp.float32)
    else:
        w = weight.reshape(Cout, Kdim).astype(jnp.bfloat16)     # (Cout, Kdim)
        b = bias.reshape(Cout, 1).astype(jnp.float32)
    return w, b


# ---------------------------------------------------------------------------
# Forward
# ---------------------------------------------------------------------------

def conv_layer_apply(x, w_prep, b_prep, *, kernel_size, stride=1,
                     channels_last=False, out_dtype=jnp.bfloat16,
                     max_tile_rows=4096, num_core_tiles=None):
    """x: (B, Cin, H, W); (w_prep, b_prep) from prepare_conv_params.

    channels_last=False (default, PyTorch parity): returns (B, Cout, OH, OW)
    written NCHW-ordered directly by the kernel (no standalone transpose).
    channels_last=True: returns lane-dense NHWC (B, OH, OW, Cout).
    """
    B, Cin, H, W = x.shape
    K = kernel_size
    OH = (H - K) // stride + 1
    OW = (W - K) // stride + 1
    OHW = OH * OW
    Kdim = Cin * K * K

    # im2col: one fused XLA op, patch features last (channel-major ordering).
    patches = lax.conv_general_dilated_patches(
        x.astype(jnp.bfloat16),
        filter_shape=(K, K),
        window_strides=(stride, stride),
        padding="VALID",
        dimension_numbers=("NCHW", "OIHW", "NHWC"),
    )                                            # (B, OH, OW, Kdim) bf16

    if channels_last:
        Cout = w_prep.shape[1]
        M = B * OHW
        p2 = patches.reshape(M, Kdim)
        if num_core_tiles is None:
            num_core_tiles = _default_num_core_tiles()
        n_tiles, tile_m, M_pad = _tiling(
            M, max_tile_rows=max_tile_rows, min_tiles=num_core_tiles)
        if M_pad != M:
            p2 = jnp.pad(p2, ((0, M_pad - M), (0, 0)))   # row pad only

        out_flat = pl.pallas_call(
            _mm_bias_relu_nhwc_kernel,
            out_shape=jax.ShapeDtypeStruct((M_pad, Cout), out_dtype),
            grid_spec=pltpu.PrefetchScalarGridSpec(
                num_scalar_prefetch=0,
                grid=(n_tiles,),
                in_specs=[
                    pl.BlockSpec((tile_m, Kdim), lambda i: (i, 0)),   # patches
                    pl.BlockSpec((Kdim, Cout), lambda i: (0, 0)),     # weight
                    pl.BlockSpec((1, Cout), lambda i: (0, 0)),        # bias
                ],
                out_specs=pl.BlockSpec((tile_m, Cout), lambda i: (i, 0)),
            ),
            compiler_params=pltpu.CompilerParams(
                dimension_semantics=("parallel",)),
        )(p2, w_prep, b_prep)

        if M_pad != M:
            # Padded rows [M, M_pad) hold relu(bias) != 0; they MUST be sliced
            # off before any downstream reduction over the flat output.
            out_flat = out_flat[:M]
        return out_flat.reshape(B, OH, OW, Cout)

    # ---- NCHW path: per-batch (Cout, OHW) blocks, transpose fused in-kernel --
    Cout = w_prep.shape[0]
    p3 = patches.reshape(B, OHW, Kdim)

    out = pl.pallas_call(
        _mm_bias_relu_nchw_kernel,
        out_shape=jax.ShapeDtypeStruct((B, Cout, OHW), out_dtype),
        grid_spec=pltpu.PrefetchScalarGridSpec(
            num_scalar_prefetch=0,
            grid=(B,),
            in_specs=[
                pl.BlockSpec((None, OHW, Kdim), lambda b: (b, 0, 0)),  # patches
                pl.BlockSpec((Cout, Kdim), lambda b: (0, 0)),          # weight
                pl.BlockSpec((Cout, 1), lambda b: (0, 0)),             # bias
            ],
            out_specs=pl.BlockSpec((None, Cout, OHW), lambda b: (b, 0, 0)),
        ),
        compiler_params=pltpu.CompilerParams(
            dimension_semantics=("parallel",)),
    )(p3, w_prep, b_prep)

    # Trailing-dim split only (same linear order) for 4-D PyTorch parity.
    return out.reshape(B, Cout, OH, OW)


def conv_layer_forward(x, weight, bias, *, stride=1, channels_last=False,
                       out_dtype=jnp.bfloat16, **kw):
    """Convenience wrapper (prep + apply). Prefer hoisting prepare_conv_params."""
    K = weight.shape[-1]
    w_prep, b_prep = prepare_conv_params(weight, bias, channels_last=channels_last)
    return conv_layer_apply(x, w_prep, b_prep, kernel_size=K, stride=stride,
                            channels_last=channels_last, out_dtype=out_dtype, **kw)


# ---------------------------------------------------------------------------
# Reference & self-test
# ---------------------------------------------------------------------------

def _reference_conv_relu(x, weight, bias, precision=None):
    y = lax.conv_general_dilated(
        x, weight, window_strides=(1, 1), padding="VALID",
        dimension_numbers=("NCHW", "OIHW", "NCHW"),
        precision=precision, preferred_element_type=jnp.float32)
    y = y + bias.reshape(1, -1, 1, 1)
    return jnp.maximum(y, 0.0)


if __name__ == "__main__":
    B, Cin, H, W = 2, 1, 28, 28
    Cout, K = 256, 9
    OH = OW = H - K + 1

    key = jax.random.PRNGKey(0)
    kx, kw, kb = jax.random.split(key, 3)

    x = jax.random.normal(kx, (B, Cin, H, W), dtype=jnp.float32)

    # PyTorch-style init: U(-1/sqrt(fan_in), 1/sqrt(fan_in))
    fan_in = Cin * K * K
    bound = 1.0 / jnp.sqrt(jnp.float32(fan_in))
    weight = jax.random.uniform(kw, (Cout, Cin, K, K), jnp.float32, -bound, bound)
    bias = jax.random.uniform(kb, (Cout,), jnp.float32, -bound, bound)

    # Hoisted weight/bias prep: done once, reused across forward calls.
    w_nchw, b_nchw = prepare_conv_params(weight, bias, channels_last=False)
    w_nhwc, b_nhwc = prepare_conv_params(weight, bias, channels_last=True)

    fwd_nchw = jax.jit(lambda xx: conv_layer_apply(
        xx, w_nchw, b_nchw, kernel_size=K, stride=1, channels_last=False))
    fwd_nhwc = jax.jit(lambda xx: conv_layer_apply(
        xx, w_nhwc, b_nhwc, kernel_size=K, stride=1, channels_last=True))

    out_nchw = jax.block_until_ready(fwd_nchw(x))
    out_nhwc = jax.block_until_ready(fwd_nhwc(x))

    assert out_nchw.shape == (B, Cout, OH, OW), out_nchw.shape
    assert out_nchw.dtype == jnp.bfloat16, out_nchw.dtype
    assert out_nhwc.shape == (B, OH, OW, Cout), out_nhwc.shape

    # References: same bf16-rounded inputs with f32 accumulation, and pure f32.
    ref_bf16 = jax.block_until_ready(_reference_conv_relu(
        x.astype(jnp.bfloat16), weight.astype(jnp.bfloat16), bias,
        precision=lax.Precision.HIGHEST))
    ref_f32 = jax.block_until_ready(_reference_conv_relu(
        x, weight, bias, precision=lax.Precision.HIGHEST))

    o = out_nchw.astype(jnp.float32)
    assert jnp.allclose(o, ref_bf16, rtol=3e-2, atol=3e-2), \
        float(jnp.max(jnp.abs(o - ref_bf16)))
    assert jnp.allclose(o, ref_f32, rtol=6e-2, atol=6e-2), \
        float(jnp.max(jnp.abs(o - ref_f32)))

    o_nhwc = out_nhwc.astype(jnp.float32).transpose(0, 3, 1, 2)
    assert jnp.allclose(o_nhwc, o, rtol=2e-2, atol=2e-2), \
        float(jnp.max(jnp.abs(o_nhwc - o)))

    # Convenience (non-hoisted) wrapper still matches.
    out_conv = jax.block_until_ready(conv_layer_forward(x, weight, bias))
    assert jnp.allclose(out_conv.astype(jnp.float32), o, rtol=2e-2, atol=2e-2)

    print("KERNEL_OK")
</pallas_src>

<mosaic_0001>
module attributes {stable_mosaic.version = 11 : i64} {
  func.func @_mm_bias_relu_nchw_kernel(%arg0: i32, %arg1: memref<1x400x81xbf16, #tpu.memory_space<vmem>>, %arg2: memref<256x81xbf16, #tpu.memory_space<vmem>>, %arg3: memref<256x1xf32, #tpu.memory_space<vmem>>, %arg4: memref<1x256x400xbf16, #tpu.memory_space<vmem>>) attributes {dimension_semantics = [#tpu.dimension_semantics<parallel>], iteration_bounds = array<i64: 2>, scalar_prefetch = 0 : i64, scratch_operands = 0 : i64, tpu.core_type = #tpu.core_type<tc>, window_params = [{transform_indices = @transform_0, window_bounds = array<i64: 1, 400, 81>}, {pipeline_mode = #tpu.pipeline_mode<synchronous>, transform_indices = @transform_1, window_bounds = array<i64: 256, 81>}, {pipeline_mode = #tpu.pipeline_mode<synchronous>, transform_indices = @transform_2, window_bounds = array<i64: 256, 1>}, {transform_indices = @transform_3, window_bounds = array<i64: 1, 256, 400>}]} {
    %c0 = arith.constant 0 : index
    %c0_0 = arith.constant 0 : index
    %0 = vector.load %arg2[%c0, %c0_0] : memref<256x81xbf16, #tpu.memory_space<vmem>>, vector<256x81xbf16>
    %c0_1 = arith.constant 0 : index
    %c0_2 = arith.constant 0 : index
    %c0_3 = arith.constant 0 : index
    %1 = vector.load %arg1[%c0_1, %c0_2, %c0_3] : memref<1x400x81xbf16, #tpu.memory_space<vmem>>, vector<1x400x81xbf16>
    %2 = vector.shape_cast %1 : vector<1x400x81xbf16> to vector<400x81xbf16>
    %cst = arith.constant dense<0.000000e+00> : vector<256x400xf32>
    %3 = tpu.matmul %0, %2, %cst {dimension_numbers = #tpu.dot_dimension_numbers<[1], [1], [0], [0], [0, 0, 1, 0], [], []>} : vector<256x81xbf16>, vector<400x81xbf16>, vector<256x400xf32> -> vector<256x400xf32>
    %c0_4 = arith.constant 0 : index
    %c0_5 = arith.constant 0 : index
    %4 = vector.load %arg3[%c0_4, %c0_5] : memref<256x1xf32, #tpu.memory_space<vmem>>, vector<256x1xf32>
    %5 = vector.broadcast %4 : vector<256x1xf32> to vector<256x400xf32>
    %6 = arith.addf %3, %5 : vector<256x400xf32>
    %cst_6 = arith.constant 0.000000e+00 : f32
    %7 = vector.broadcast %cst_6 : f32 to vector<256x400xf32>
    %8 = arith.maximumf %6, %7 : vector<256x400xf32>
    %9 = arith.truncf %8 : vector<256x400xf32> to vector<256x400xbf16>
    %c0_7 = arith.constant 0 : index
    %c0_8 = arith.constant 0 : index
    %c0_9 = arith.constant 0 : index
    %10 = vector.load %arg4[%c0_7, %c0_8, %c0_9] : memref<1x256x400xbf16, #tpu.memory_space<vmem>>, vector<1x256x400xbf16>
    %11 = vector.shape_cast %10 : vector<1x256x400xbf16> to vector<256x400xbf16>
    %12 = vector.shape_cast %9 : vector<256x400xbf16> to vector<1x256x400xbf16>
    tpu.vector_store %arg4[%c0_7, %c0_8, %c0_9], %12 {strides = array<i32>} : memref<1x256x400xbf16, #tpu.memory_space<vmem>>, vector<1x256x400xbf16>,
    return
  }
  func.func @transform_0(%arg0: i32) -> (i32, i32, i32) {
    %c0_i32 = arith.constant 0 : i32
    %c0_i32_0 = arith.constant 0 : i32
    %c0_i32_1 = arith.constant 0 : i32
    return %arg0, %c0_i32, %c0_i32_0 : i32, i32, i32
  }
  func.func @transform_1(%arg0: i32) -> (i32, i32) {
    %c0_i32 = arith.constant 0 : i32
    %c0_i32_0 = arith.constant 0 : i32
    %c0_i32_1 = arith.constant 0 : i32
    return %c0_i32, %c0_i32_0 : i32, i32
  }
  func.func @transform_2(%arg0: i32) -> (i32, i32) {
    %c0_i32 = arith.constant 0 : i32
    %c0_i32_0 = arith.constant 0 : i32
    %c0_i32_1 = arith.constant 0 : i32
    return %c0_i32, %c0_i32_0 : i32, i32
  }
  func.func @transform_3(%arg0: i32) -> (i32, i32, i32) {
    %c0_i32 = arith.constant 0 : i32
    %c0_i32_0 = arith.constant 0 : i32
    %c0_i32_1 = arith.constant 0 : i32
    return %arg0, %c0_i32, %c0_i32_0 : i32, i32, i32
  }
}

</mosaic_0001>

<llo_original>
// kernel: _lambda_.1
$region0: #{_lambda_.1}
  #allocation0 [shape = 'u32[]', space=smem, size = 0x4, offset = 0x4, fixed_abs, tag = 'smem constant byte address 0x4 - core index']
  #allocation1 [shape = 'u32[144,128]{1,0:T(1,128)}', space=vmem, size = 0x12000, scoped, tag = 'internal scratch']
  %s0 = inlined_call_operand.vmem [shape: bf16[2,400,81], index: 0, kind: input, shape index: {}]
  %s1 = inlined_call_operand.vmem [shape: bf16[256,81], index: 1, kind: input, shape index: {}]
  %s2 = inlined_call_operand.vmem [shape: f32[256,1], index: 2, kind: input, shape index: {}]
  %s3 = inlined_call_operand.vmem [shape: bf16[2,256,400], index: 3, kind: output, shape index: {}]
  %s4 = sld [smem:[#allocation0]]
  $region45: #{_lambda_.1} parent=0
    _
  %s6 = ssub.s32 1, %s4
  %s7 = scalar_select 0, %s6, %s4
  loop: start=0, step=1, limit=4
  $region2: #{_lambda_.1} parent=0 // loop_pre_header
    _
  $region3: #{_lambda_.1} parent=0 // loop_header
    %s9 = sphi 0, %s13
    %p10 = scmp.ge.s32.totalorder %s9, 4
    %s19 = sphi 0, %s21
    %s22 = sphi 0, %s19
    %s23 = sphi 0, %s22
    %s39 = sphi 0, %s23
    %s43 = sphi 0, %s43
    %s45 = sphi 0, %s43
    %s46 = sphi 0, %s45
    %s60 = sphi 0, %s46
    %s64 = sphi 0, %s64
    %s66 = sphi 0, %s64
    %s67 = sphi 0, %s66
    %s81 = sphi 0, %s67
    %s87 = sphi 0, %s89
    %s90 = sphi 0, %s87
    %s91 = sphi 0, %s90
    %s107 = sphi 0, %s91
  $region4: #{_lambda_.1} parent=0 // loop_header_branch
    %12 = sbr.rel (%p10) target = $region8
  $region5: #{_lambda_.1} parent=0 // loop_body
    %s14 = ssub.s32 %s9, 1
    %s15 = ssub.s32 %s9, 2
    %s16 = sadd.s32 %s9, 1
    %s17 = ssub.s32 %s9, %s16
    %p18 = scmp.eq.s32.totalorder %s17, 0
    %s20 = sadd.s32 %s19, 1
    %s21 = scalar_select %p18, %s19, %s20
    %p24 = pneg %p18
    %p25 = scmp.eq.s32.totalorder %s9, 1
    %p26 = por %p24, %p25
    %p27 = scmp.ne.s32.totalorder %s19, %s22
    %p28 = scmp.eq.s32.totalorder %s9, 0
    %p29 = por %p27, %p28
    %p30 = scmp.ne.s32.totalorder %s19, %s22
    %p31 = scmp.eq.s32.totalorder %s14, 1
    %p32 = por %p30, %p31
    %p33 = scmp.ne.s32.totalorder %s22, %s23
    %p34 = scmp.eq.s32.totalorder %s14, 0
    %p35 = por %p33, %p34
    %p36 = scmp.ne.s32.totalorder %s22, %s23
    %p37 = scmp.eq.s32.totalorder %s15, 1
    %p38 = por %p36, %p37
    %p40 = scmp.ne.s32.totalorder %s23, %s39
    %p41 = scmp.eq.s32.totalorder %s15, 0
    %p42 = por %p40, %p41
    %s44 = sadd.s32 %s43, 1
    %p47 = scmp.eq.s32.totalorder %s9, 1
    %p48 = scmp.ne.s32.totalorder %s43, %s45
    %p49 = scmp.eq.s32.totalorder %s9, 0
    %p50 = por %p48, %p49
    %p51 = scmp.ne.s32.totalorder %s43, %s45
    %p52 = scmp.eq.s32.totalorder %s14, 1
    %p53 = por %p51, %p52
    %p54 = scmp.ne.s32.totalorder %s45, %s46
    %p55 = scmp.eq.s32.totalorder %s14, 0
    %p56 = por %p54, %p55
    %p57 = scmp.ne.s32.totalorder %s45, %s46
    %p58 = scmp.eq.s32.totalorder %s15, 1
    %p59 = por %p57, %p58
    %p61 = scmp.ne.s32.totalorder %s46, %s60
    %p62 = scmp.eq.s32.totalorder %s15, 0
    %p63 = por %p61, %p62
    %s65 = sadd.s32 %s64, 1
    %p68 = scmp.eq.s32.totalorder %s9, 1
    %p69 = scmp.ne.s32.totalorder %s64, %s66
    %p70 = scmp.eq.s32.totalorder %s9, 0
    %p71 = por %p69, %p70
    %p72 = scmp.ne.s32.totalorder %s64, %s66
    %p73 = scmp.eq.s32.totalorder %s14, 1
    %p74 = por %p72, %p73
    %p75 = scmp.ne.s32.totalorder %s66, %s67
    %p76 = scmp.eq.s32.totalorder %s14, 0
    %p77 = por %p75, %p76
    %p78 = scmp.ne.s32.totalorder %s66, %s67
    %p79 = scmp.eq.s32.totalorder %s15, 1
    %p80 = por %p78, %p79
    %p82 = scmp.ne.s32.totalorder %s67, %s81
    %p83 = scmp.eq.s32.totalorder %s15, 0
    %p84 = por %p82, %p83
    %s85 = ssub.s32 %s9, %s16
    %p86 = scmp.eq.s32.totalorder %s85, 0
    %s88 = sadd.s32 %s87, 1
    %s89 = scalar_select %p86, %s87, %s88
    %p92 = pneg %p86
    %p93 = scmp.eq.s32.totalorder %s9, 1
    %p94 = por %p92, %p93
    %p95 = scmp.ne.s32.totalorder %s87, %s90
    %p96 = scmp.eq.s32.totalorder %s9, 0
    %p97 = por %p95, %p96
    %p98 = scmp.ne.s32.totalorder %s87, %s90
    %p99 = scmp.eq.s32.totalorder %s14, 1
    %p100 = por %p98, %p99
    %p101 = scmp.ne.s32.totalorder %s90, %s91
    %p102 = scmp.eq.s32.totalorder %s14, 0
    %p103 = por %p101, %p102
    %p104 = scmp.ne.s32.totalorder %s90, %s91
    %p105 = scmp.eq.s32.totalorder %s15, 1
    %p106 = por %p104, %p105
    %p108 = scmp.ne.s32.totalorder %s91, %s107
    %p109 = scmp.eq.s32.totalorder %s15, 0
    %p110 = por %p108, %p109
    %p111 = scmp.le.s32.totalorder 1, %s9
    %p112 = scmp.lt.s32.totalorder %s9, 3
    %p113 = pnand %p111, %p112
    %p114 = pneg %p113
    // Predicated region
    $region9: #{_lambda_.1} parent=5 // pred_check
      _
    $region10: #{_lambda_.1} parent=5 // pred_check_branch
      %116 = sbr.rel (%p113) target = $region12
    $region11: #{_lambda_.1} parent=5 // pred_region
      %s117 = ssub.s32 %s9, 1
      // Predicated region
      $region13: #{_lambda_.1} parent=11 // pred_check
        %p118 = pneg %p56
      $region14: #{_lambda_.1} parent=11 // pred_check_branch
        %120 = sbr.rel (%p118) target = $region16
      $region15: #{_lambda_.1} parent=11 // pred_region
        _
      $region16: #{_lambda_.1} parent=11 // pred_fallthru
        _
      // Predicated region
      $region17: #{_lambda_.1} parent=11 // pred_check
        %p121 = pneg %p77
      $region18: #{_lambda_.1} parent=11 // pred_check_branch
        %123 = sbr.rel (%p121) target = $region20
      $region19: #{_lambda_.1} parent=11 // pred_region
        _
      $region20: #{_lambda_.1} parent=11 // pred_fallthru
        _
    $region12: #{_lambda_.1} parent=5 // pred_fallthru
      _
    %p124 = scmp.lt.s32.totalorder %s9, 2
    // Predicated region
    $region21: #{_lambda_.1} parent=5 // pred_check
      %p125 = pneg %p124
    $region22: #{_lambda_.1} parent=5 // pred_check_branch
      %127 = sbr.rel (%p125) target = $region24
    $region23: #{_lambda_.1} parent=5 // pred_region
      // Predicated region
      $region25: #{_lambda_.1} parent=23 // pred_check
        %p128 = pneg %p29
      $region26: #{_lambda_.1} parent=23 // pred_check_branch
        %130 = sbr.rel (%p128) target = $region28
      $region27: #{_lambda_.1} parent=23 // pred_region
        %p131 = scmp.lt.s32.totalorder %s9, 1
        %s132 = scalar_select %p131, %s9, 1
        %s133 = smul.addr %s132, 50
        %s134 = smul.addr %s133, 4
        %s135 = scalar_lea.vmem %s0, %s134
      $region28: #{_lambda_.1} parent=23 // pred_fallthru
        _
    $region24: #{_lambda_.1} parent=5 // pred_fallthru
      _
    %p136 = scmp.le.s32.totalorder 1, %s9
    %p137 = scmp.lt.s32.totalorder %s9, 3
    %p138 = pnand %p136, %p137
    %p139 = pneg %p138
    // Predicated region
    $region29: #{_lambda_.1} parent=5 // pred_check
      _
    $region30: #{_lambda_.1} parent=5 // pred_check_branch
      %141 = sbr.rel (%p138) target = $region32
    $region31: #{_lambda_.1} parent=5 // pred_region
      %s142 = ssub.s32 %s9, 1
      %p143 = scmp.lt.s32.totalorder %s14, 1
      %s144 = scalar_select %p143, %s14, 1
      %s145 = smul.addr %s144, 50
      %s146 = smul.addr %s145, 4
      %s147 = scalar_lea.vmem %s0, %s146
      %p148 = pneg %p35
      %p149 = pneg %p32
      %p150 = pneg %p56
      %p151 = pneg %p53
      %p152 = pneg %p77
      %p153 = pneg %p74
      %p154 = pneg %p103
      %p155 = pneg %p100
      %p156 = scmp.lt.s32.totalorder %s14, 1
      %s157 = scalar_select %p156, %s14, 1
      %s158 = smul.addr %s157, 128
      %s159 = smul.addr %s158, 4
      %s160 = scalar_lea.vmem %s3, %s159
      %p161 = scmp.lt.s32.totalorder %s14, 1
      %s162 = scalar_select %p161, %s14, 1
      %s163 = smul.addr %s162, 50
      %s164 = smul.addr %s163, 4
      %s165 = scalar_lea.vmem %s0, %s164
      %p166 = scmp.lt.s32.totalorder %s14, 1
      %s167 = scalar_select %p166, %s14, 1
      %s168 = smul.addr %s167, 128
      %s169 = smul.addr %s168, 4
      %s170 = scalar_lea.vmem %s3, %s169
      %v172 = vld [vmem:[%s1] sm:$0xf]
      %v173 = vld [vmem:[%s1 + $0x4] sm:$0xf]
      %v174 = vld [vmem:[%s1 + $0x8] sm:$0xf]
      %v175 = vld [vmem:[%s1 + $0xc] sm:$0xf]
      %v176 = vld [vmem:[%s1 + $0x10] sm:$0xf]
      %v177 = vld [vmem:[%s1 + $0x14] sm:$0xf]
      %v178 = vld [vmem:[%s1 + $0x18] sm:$0xf]
      %v179 = vld [vmem:[%s1 + $0x1c] sm:$0xf]
      %v180 = vld [vmem:[%s1 + $0x20] sm:$0xf]
      %v181 = vld [vmem:[%s1 + $0x24] sm:$0xf]
      %v182 = vld [vmem:[%s1 + $0x28] sm:$0xf]
      %v183 = vld [vmem:[%s1 + $0x2c] sm:$0xf]
      %v184 = vld [vmem:[%s1 + $0x30] sm:$0xf]
      %v185 = vld [vmem:[%s1 + $0x34] sm:$0xf]
      %v186 = vld [vmem:[%s1 + $0x38] sm:$0xf]
      %v187 = vld [vmem:[%s1 + $0x3c] sm:$0xf]
      %v188 = vld [vmem:[%s1 + $0x40] sm:$0xf]
      %v189 = vld [vmem:[%s1 + $0x44] sm:$0xf]
      %v190 = vld [vmem:[%s1 + $0x48] sm:$0xf]
      %v191 = vld [vmem:[%s1 + $0x4c] sm:$0xf]
      %v192 = vld [vmem:[%s1 + $0x50] sm:$0xf]
      %v193 = vld [vmem:[%s1 + $0x54] sm:$0xf]
      %v194 = vld [vmem:[%s1 + $0x58] sm:$0xf]
      %v195 = vld [vmem:[%s1 + $0x5c] sm:$0xf]
      %v196 = vld [vmem:[%s1 + $0x60] sm:$0xf]
      %v197 = vld [vmem:[%s1 + $0x64] sm:$0xf]
      %v198 = vld [vmem:[%s1 + $0x68] sm:$0xf]
      %v199 = vld [vmem:[%s1 + $0x6c] sm:$0xf]
      %v200 = vld [vmem:[%s1 + $0x70] sm:$0xf]
      %v201 = vld [vmem:[%s1 + $0x74] sm:$0xf]
      %v202 = vld [vmem:[%s1 + $0x78] sm:$0xf]
      %v203 = vld [vmem:[%s1 + $0x7c] sm:$0xf]
      %v204 = vld [vmem:[%s165] sm:$0xf]
      %v205 = vld [vmem:[%s165 + $0x4] sm:$0xf]
      %v206 = vld [vmem:[%s165 + $0x8] sm:$0xf]
      %v207 = vld [vmem:[%s165 + $0xc] sm:$0xf]
      %v208 = vld [vmem:[%s165 + $0x10] sm:$0xf]
      %v209 = vld [vmem:[%s165 + $0x14] sm:$0xf]
      %v210 = vld [vmem:[%s165 + $0x18] sm:$0xf]
      %v211 = vld [vmem:[%s165 + $0x1c] sm:$0xf]
      %v212 = vld [vmem:[%s165 + $0x20] sm:$0xf]
      %v213 = vld [vmem:[%s165 + $0x24] sm:$0xf]
      %v214 = vld [vmem:[%s165 + $0x28] sm:$0xf]
      %v215 = vld [vmem:[%s165 + $0x2c] sm:$0xf]
      %v216 = vld [vmem:[%s165 + $0x30] sm:$0xf]
      %v217 = vld [vmem:[%s165 + $0x34] sm:$0xf]
      %v218 = vld [vmem:[%s165 + $0x38] sm:$0xf]
      %v219 = vld [vmem:[%s165 + $0x3c] sm:$0xf]
      %v220 = vld [vmem:[%s165 + $0x40] sm:$0xf]
      %v221 = vld [vmem:[%s165 + $0x44] sm:$0xf]
      %v222 = vld [vmem:[%s165 + $0x48] sm:$0xf]
      %v223 = vld [vmem:[%s165 + $0x4c] sm:$0xf]
      %v224 = vld [vmem:[%s165 + $0x50] sm:$0xf]
      %v225 = vld [vmem:[%s165 + $0x54] sm:$0xf]
      %v226 = vld [vmem:[%s165 + $0x58] sm:$0xf]
      %v227 = vld [vmem:[%s165 + $0x5c] sm:$0xf]
      %v228 = vld [vmem:[%s165 + $0x60] sm:$0xf]
      %v229 = vld [vmem:[%s165 + $0x64] sm:$0xf]
      %v230 = vld [vmem:[%s165 + $0x68] sm:$0xf]
      %v231 = vld [vmem:[%s165 + $0x6c] sm:$0xf]
      %v232 = vld [vmem:[%s165 + $0x70] sm:$0xf]
      %v233 = vld [vmem:[%s165 + $0x74] sm:$0xf]
      %v234 = vld [vmem:[%s165 + $0x78] sm:$0xf]
      %v235 = vld [vmem:[%s165 + $0x7c] sm:$0xf]
      %v236 = vld [vmem:[%s165 + $0x80] sm:$0xf]
      %v237 = vld [vmem:[%s165 + $0x84] sm:$0xf]
      %v238 = vld [vmem:[%s165 + $0x88] sm:$0xf]
      %v239 = vld [vmem:[%s165 + $0x8c] sm:$0xf]
      %v240 = vld [vmem:[%s165 + $0x90] sm:$0xf]
      %v241 = vld [vmem:[%s165 + $0x94] sm:$0xf]
      %v242 = vld [vmem:[%s165 + $0x98] sm:$0xf]
      %v243 = vld [vmem:[%s165 + $0x9c] sm:$0xf]
      %v244 = vld [vmem:[%s165 + $0xa0] sm:$0xf]
      %v245 = vld [vmem:[%s165 + $0xa4] sm:$0xf]
      %v246 = vld [vmem:[%s165 + $0xa8] sm:$0xf]
      %v247 = vld [vmem:[%s165 + $0xac] sm:$0xf]
      %v248 = vld [vmem:[%s165 + $0xb0] sm:$0xf]
      %v249 = vld [vmem:[%s165 + $0xb4] sm:$0xf]
      %v250 = vld [vmem:[%s165 + $0xb8] sm:$0xf]
      %v251 = vld [vmem:[%s165 + $0xbc] sm:$0xf]
      %v252 = vld [vmem:[%s165 + $0xc0] sm:$0xf]
      %v253 = vld [vmem:[%s165 + $0xc4] sm:$0xf]
      %v254 = vld [vmem:[%s2] sm:$0xff]
      %v255 = vld [vmem:[%s2 + $0x8] sm:$0xff]
      %v256 = vld [vmem:[%s2 + $0x10] sm:$0xff]
      %v257 = vld [vmem:[%s2 + $0x18] sm:$0xff]
      %v258 = vld [vmem:[%s2 + $0x20] sm:$0xff]
      %v259 = vld [vmem:[%s2 + $0x28] sm:$0xff]
      %v260 = vld [vmem:[%s2 + $0x30] sm:$0xff]
      %v261 = vld [vmem:[%s2 + $0x38] sm:$0xff]
      %v262 = vld [vmem:[%s2 + $0x40] sm:$0xff]
      %v263 = vld [vmem:[%s2 + $0x48] sm:$0xff]
      %v264 = vld [vmem:[%s2 + $0x50] sm:$0xff]
      %v265 = vld [vmem:[%s2 + $0x58] sm:$0xff]
      %v266 = vld [vmem:[%s2 + $0x60] sm:$0xff]
      %v267 = vld [vmem:[%s2 + $0x68] sm:$0xff]
      %v268 = vld [vmem:[%s2 + $0x70] sm:$0xff]
      %v269 = vld [vmem:[%s2 + $0x78] sm:$0xff]
      %v270 = vld [vmem:[%s2 + $0x80] sm:$0xff]
      %v271 = vld [vmem:[%s2 + $0x88] sm:$0xff]
      %v272 = vld [vmem:[%s2 + $0x90] sm:$0xff]
      %v273 = vld [vmem:[%s2 + $0x98] sm:$0xff]
      %v274 = vld [vmem:[%s2 + $0xa0] sm:$0xff]
      %v275 = vld [vmem:[%s2 + $0xa8] sm:$0xff]
      %v276 = vld [vmem:[%s2 + $0xb0] sm:$0xff]
      %v277 = vld [vmem:[%s2 + $0xb8] sm:$0xff]
      %v278 = vld [vmem:[%s2 + $0xc0] sm:$0xff]
      %v279 = vld [vmem:[%s2 + $0xc8] sm:$0xff]
      %v280 = vld [vmem:[%s2 + $0xd0] sm:$0xff]
      %v281 = vld [vmem:[%s2 + $0xd8] sm:$0xff]
      %v282 = vld [vmem:[%s2 + $0xe0] sm:$0xff]
      %v283 = vld [vmem:[%s2 + $0xe8] sm:$0xff]
      %v284 = vld [vmem:[%s2 + $0xf0] sm:$0xff]
      %v285 = vld [vmem:[%s2 + $0xf8] sm:$0xff]
      %287 = vset.pattern.permute.xlu0 0
      %288 = vperm.xlu0 %287, %v254
      %v289 = vpop.permute.xlu0 %288
      %292 = vset.pattern.permute.xlu0 0
      %293 = vperm.xlu0 %292, %v255
      %v294 = vpop.permute.xlu0 %293
      %297 = vset.pattern.permute.xlu0 0
      %298 = vperm.xlu0 %297, %v256
      %v299 = vpop.permute.xlu0 %298
      %302 = vset.pattern.permute.xlu0 0
      %303 = vperm.xlu0 %302, %v257
      %v304 = vpop.permute.xlu0 %303
      %307 = vset.pattern.permute.xlu0 0
      %308 = vperm.xlu0 %307, %v258
      %v309 = vpop.permute.xlu0 %308
      %312 = vset.pattern.permute.xlu0 0
      %313 = vperm.xlu0 %312, %v259
      %v314 = vpop.permute.xlu0 %313
      %317 = vset.pattern.permute.xlu0 0
      %318 = vperm.xlu0 %317, %v260
      %v319 = vpop.permute.xlu0 %318
      %322 = vset.pattern.permute.xlu0 0
      %323 = vperm.xlu0 %322, %v261
      %v324 = vpop.permute.xlu0 %323
      %327 = vset.pattern.permute.xlu0 0
      %328 = vperm.xlu0 %327, %v262
      %v329 = vpop.permute.xlu0 %328
      %332 = vset.pattern.permute.xlu0 0
      %333 = vperm.xlu0 %332, %v263
      %v334 = vpop.permute.xlu0 %333
      %337 = vset.pattern.permute.xlu0 0
      %338 = vperm.xlu0 %337, %v264
      %v339 = vpop.permute.xlu0 %338
      %342 = vset.pattern.permute.xlu0 0
      %343 = vperm.xlu0 %342, %v265
      %v344 = vpop.permute.xlu0 %343
      %347 = vset.pattern.permute.xlu0 0
      %348 = vperm.xlu0 %347, %v266
      %v349 = vpop.permute.xlu0 %348
      %352 = vset.pattern.permute.xlu0 0
      %353 = vperm.xlu0 %352, %v267
      %v354 = vpop.permute.xlu0 %353
      %357 = vset.pattern.permute.xlu0 0
      %358 = vperm.xlu0 %357, %v268
      %v359 = vpop.permute.xlu0 %358
      %362 = vset.pattern.permute.xlu0 0
      %363 = vperm.xlu0 %362, %v269
      %v364 = vpop.permute.xlu0 %363
      %367 = vset.pattern.permute.xlu0 0
      %368 = vperm.xlu0 %367, %v270
      %v369 = vpop.permute.xlu0 %368
      %372 = vset.pattern.permute.xlu0 0
      %373 = vperm.xlu0 %372, %v271
      %v374 = vpop.permute.xlu0 %373
      %377 = vset.pattern.permute.xlu0 0
      %378 = vperm.xlu0 %377, %v272
      %v379 = vpop.permute.xlu0 %378
      %382 = vset.pattern.permute.xlu0 0
      %383 = vperm.xlu0 %382, %v273
      %v384 = vpop.permute.xlu0 %383
      %387 = vset.pattern.permute.xlu0 0
      %388 = vperm.xlu0 %387, %v274
      %v389 = vpop.permute.xlu0 %388
      %392 = vset.pattern.permute.xlu0 0
      %393 = vperm.xlu0 %392, %v275
      %v394 = vpop.permute.xlu0 %393
      %397 = vset.pattern.permute.xlu0 0
      %398 = vperm.xlu0 %397, %v276
      %v399 = vpop.permute.xlu0 %398
      %402 = vset.pattern.permute.xlu0 0
      %403 = vperm.xlu0 %402, %v277
      %v404 = vpop.permute.xlu0 %403
      %407 = vset.pattern.permute.xlu0 0
      %408 = vperm.xlu0 %407, %v278
      %v409 = vpop.permute.xlu0 %408
      %412 = vset.pattern.permute.xlu0 0
      %413 = vperm.xlu0 %412, %v279
      %v414 = vpop.permute.xlu0 %413
      %417 = vset.pattern.permute.xlu0 0
      %418 = vperm.xlu0 %417, %v280
      %v419 = vpop.permute.xlu0 %418
      %422 = vset.pattern.permute.xlu0 0
      %423 = vperm.xlu0 %422, %v281
      %v424 = vpop.permute.xlu0 %423
      %427 = vset.pattern.permute.xlu0 0
      %428 = vperm.xlu0 %427, %v282
      %v429 = vpop.permute.xlu0 %428
      %432 = vset.pattern.permute.xlu0 0
      %433 = vperm.xlu0 %432, %v283
      %v434 = vpop.permute.xlu0 %433
      %437 = vset.pattern.permute.xlu0 0
      %438 = vperm.xlu0 %437, %v284
      %v439 = vpop.permute.xlu0 %438
      %442 = vset.pattern.permute.xlu0 0
      %443 = vperm.xlu0 %442, %v285
      %v444 = vpop.permute.xlu0 %443
      %v478 = vunpack.c.l.b16 %v172
      %v479 = vunpack.c.l.b16 %v173
      %v480 = vunpack.c.l.b16 %v174
      %v481 = vunpack.c.l.b16 %v175
      %v482 = vunpack.c.l.b16 %v176
      %v483 = vunpack.c.l.b16 %v177
      %v484 = vunpack.c.l.b16 %v178
      %v485 = vunpack.c.l.b16 %v179
      %v486 = vunpack.c.l.b16 %v180
      %v487 = vunpack.c.l.b16 %v181
      %v488 = vunpack.c.l.b16 %v182
      %v489 = vunpack.c.l.b16 %v183
      %v490 = vunpack.c.l.b16 %v184
      %v491 = vunpack.c.l.b16 %v185
      %v492 = vunpack.c.l.b16 %v186
      %v493 = vunpack.c.l.b16 %v187
      %v494 = vunpack.c.l.b16 %v188
      %v495 = vunpack.c.l.b16 %v189
      %v496 = vunpack.c.l.b16 %v190
      %v497 = vunpack.c.l.b16 %v191
      %v498 = vunpack.c.l.b16 %v192
      %v499 = vunpack.c.l.b16 %v193
      %v500 = vunpack.c.l.b16 %v194
      %v501 = vunpack.c.l.b16 %v195
      %v502 = vunpack.c.l.b16 %v196
      %v503 = vunpack.c.l.b16 %v197
      %v504 = vunpack.c.l.b16 %v198
      %v505 = vunpack.c.l.b16 %v199
      %v506 = vunpack.c.l.b16 %v200
      %v507 = vunpack.c.l.b16 %v201
      %v508 = vunpack.c.l.b16 %v202
      %v509 = vunpack.c.l.b16 %v203
      %v510 = vpack.c.b16 %v479, %v478
      %v511 = vpack.c.b16 %v481, %v480
      %v512 = vpack.c.b16 %v483, %v482
      %v513 = vpack.c.b16 %v485, %v484
      %v514 = vpack.c.b16 %v487, %v486
      %v515 = vpack.c.b16 %v489, %v488
      %v516 = vpack.c.b16 %v491, %v490
      %v517 = vpack.c.b16 %v493, %v492
      %v518 = vpack.c.b16 %v495, %v494
      %v519 = vpack.c.b16 %v497, %v496
      %v520 = vpack.c.b16 %v499, %v498
      %v521 = vpack.c.b16 %v501, %v500
      %v522 = vpack.c.b16 %v503, %v502
      %v523 = vpack.c.b16 %v505, %v504
      %v524 = vpack.c.b16 %v507, %v506
      %v525 = vpack.c.b16 %v509, %v508
      %v576 = vunpack.c.l.b16 %v204
      %v577 = vunpack.c.l.b16 %v205
      %v578 = vunpack.c.l.b16 %v206
      %v579 = vunpack.c.l.b16 %v207
      %v580 = vunpack.c.l.b16 %v208
      %v581 = vunpack.c.l.b16 %v209
      %v582 = vunpack.c.l.b16 %v210
      %v583 = vunpack.c.l.b16 %v211
      %v584 = vunpack.c.l.b16 %v212
      %v585 = vunpack.c.l.b16 %v213
      %v586 = vunpack.c.l.b16 %v214
      %v587 = vunpack.c.l.b16 %v215
      %v588 = vunpack.c.l.b16 %v216
      %v589 = vunpack.c.l.b16 %v217
      %v590 = vunpack.c.l.b16 %v218
      %v591 = vunpack.c.l.b16 %v219
      %v592 = vunpack.c.l.b16 %v220
      %v593 = vunpack.c.l.b16 %v221
      %v594 = vunpack.c.l.b16 %v222
      %v595 = vunpack.c.l.b16 %v223
      %v596 = vunpack.c.l.b16 %v224
      %v597 = vunpack.c.l.b16 %v225
      %v598 = vunpack.c.l.b16 %v226
      %v599 = vunpack.c.l.b16 %v227
      %v600 = vunpack.c.l.b16 %v228
      %v601 = vunpack.c.l.b16 %v229
      %v602 = vunpack.c.l.b16 %v230
      %v603 = vunpack.c.l.b16 %v231
      %v604 = vunpack.c.l.b16 %v232
      %v605 = vunpack.c.l.b16 %v233
      %v606 = vunpack.c.l.b16 %v234
      %v607 = vunpack.c.l.b16 %v235
      %v608 = vunpack.c.l.b16 %v236
      %v609 = vunpack.c.l.b16 %v237
      %v610 = vunpack.c.l.b16 %v238
      %v611 = vunpack.c.l.b16 %v239
      %v612 = vunpack.c.l.b16 %v240
      %v613 = vunpack.c.l.b16 %v241
      %v614 = vunpack.c.l.b16 %v242
      %v615 = vunpack.c.l.b16 %v243
      %v616 = vunpack.c.l.b16 %v244
      %v617 = vunpack.c.l.b16 %v245
      %v618 = vunpack.c.l.b16 %v246
      %v619 = vunpack.c.l.b16 %v247
      %v620 = vunpack.c.l.b16 %v248
      %v621 = vunpack.c.l.b16 %v249
      %v622 = vunpack.c.l.b16 %v250
      %v623 = vunpack.c.l.b16 %v251
      %v624 = vunpack.c.l.b16 %v252
      %v625 = vunpack.c.l.b16 %v253
      %v626 = vpack.c.b16 %v577, %v576
      %v627 = vpack.c.b16 %v579, %v578
      %v628 = vpack.c.b16 %v581, %v580
      %v629 = vpack.c.b16 %v583, %v582
      %v630 = vpack.c.b16 %v585, %v584
      %v631 = vpack.c.b16 %v587, %v586
      %v632 = vpack.c.b16 %v589, %v588
      %v633 = vpack.c.b16 %v591, %v590
      %v634 = vpack.c.b16 %v593, %v592
      %v635 = vpack.c.b16 %v595, %v594
      %v636 = vpack.c.b16 %v597, %v596
      %v637 = vpack.c.b16 %v599, %v598
      %v638 = vpack.c.b16 %v601, %v600
      %v639 = vpack.c.b16 %v603, %v602
      %v640 = vpack.c.b16 %v605, %v604
      %v641 = vpack.c.b16 %v607, %v606
      %v642 = vpack.c.b16 %v609, %v608
      %v643 = vpack.c.b16 %v611, %v610
      %v644 = vpack.c.b16 %v613, %v612
      %v645 = vpack.c.b16 %v615, %v614
      %v646 = vpack.c.b16 %v617, %v616
      %v647 = vpack.c.b16 %v619, %v618
      %v648 = vpack.c.b16 %v621, %v620
      %v649 = vpack.c.b16 %v623, %v622
      %v650 = vpack.c.b16 %v625, %v624
      %vm651 = vcmask 662528
      %v653 = vsel %vm651, %v510, 0
      %v656 = vsel %vm651, %v511, 0
      %v659 = vsel %vm651, %v512, 0
      %v662 = vsel %vm651, %v513, 0
      %v665 = vsel %vm651, %v514, 0
      %v668 = vsel %vm651, %v515, 0
      %v671 = vsel %vm651, %v516, 0
      %v674 = vsel %vm651, %v517, 0
      %v677 = vsel %vm651, %v518, 0
      %v680 = vsel %vm651, %v519, 0
      %v683 = vsel %vm651, %v520, 0
      %v686 = vsel %vm651, %v521, 0
      %v689 = vsel %vm651, %v522, 0
      %v692 = vsel %vm651, %v523, 0
      %v695 = vsel %vm651, %v524, 0
      %v698 = vsel %vm651, %v525, 0
      %v701 = vsel %vm651, %v626, 0
      %v704 = vsel %vm651, %v627, 0
      %v707 = vsel %vm651, %v628, 0
      %v710 = vsel %vm651, %v629, 0
      %v713 = vsel %vm651, %v630, 0
      %v716 = vsel %vm651, %v631, 0
      %v719 = vsel %vm651, %v632, 0
      %v722 = vsel %vm651, %v633, 0
      %v725 = vsel %vm651, %v634, 0
      %v728 = vsel %vm651, %v635, 0
      %v731 = vsel %vm651, %v636, 0
      %v734 = vsel %vm651, %v637, 0
      %v737 = vsel %vm651, %v638, 0
      %v740 = vsel %vm651, %v639, 0
      %v743 = vsel %vm651, %v640, 0
      %v746 = vsel %vm651, %v641, 0
      %v749 = vsel %vm651, %v642, 0
      %v752 = vsel %vm651, %v643, 0
      %v755 = vsel %vm651, %v644, 0
      %v758 = vsel %vm651, %v645, 0
      %v761 = vsel %vm651, %v646, 0
      %v764 = vsel %vm651, %v647, 0
      %v767 = vsel %vm651, %v648, 0
      %v770 = vsel %vm651, %v649, 0
      %v773 = vsel %vm651, %v650, 0
      %775 = vmatprep.subr.bf16.mxu0 0
      %776 = vmatpush1.bf16.xpose.msra.mxu0 %v722
      %777 = vmatprep.subr.bf16.mxu0 0
      %778 = vmatpush1.bf16.xpose.msra.mxu0 %v719
      %779 = vmatprep.subr.bf16.mxu0 0
      %780 = vmatpush1.bf16.xpose.msra.mxu0 %v716
      %781 = vmatprep.subr.bf16.mxu0 0
      %782 = vmatpush1.bf16.xpose.msra.mxu0 %v713
      %783 = vmatprep.subr.bf16.mxu0 0
      %784 = vmatpush1.bf16.xpose.msra.mxu0 %v710
      %785 = vmatprep.subr.bf16.mxu0 0
      %786 = vmatpush1.bf16.xpose.msra.mxu0 %v707
      %787 = vmatprep.subr.bf16.mxu0 0
      %788 = vmatpush1.bf16.xpose.msra.mxu0 %v704
      %789 = vmatprep.subr.bf16.mxu0 0
      %790 = vmatpush1.bf16.xpose.msra.mxu0 %v701
      %791 = vmatprep.subr.bf16.mxu0 0
      %792 = vmatpush2.bf16.xpose.msra.mxu0 %v746
      %793 = vmatprep.subr.bf16.mxu0 0
      %794 = vmatpush2.bf16.xpose.msra.mxu0 %v743
      %795 = vmatprep.subr.bf16.mxu0 0
      %796 = vmatpush2.bf16.xpose.msra.mxu0 %v740
      %797 = vmatprep.subr.bf16.mxu0 0
      %798 = vmatpush2.bf16.xpose.msra.mxu0 %v737
      %799 = vmatprep.subr.bf16.mxu0 0
      %800 = vmatpush2.bf16.xpose.msra.mxu0 %v734
      %801 = vmatprep.subr.bf16.mxu0 0
      %802 = vmatpush2.bf16.xpose.msra.mxu0 %v731
      %803 = vmatprep.subr.bf16.mxu0 0
      %804 = vmatpush2.bf16.xpose.msra.mxu0 %v728
      %805 = vmatprep.subr.bf16.mxu0 0
      %806 = vmatpush2.bf16.xpose.msra.mxu0 %v725
      %807 = vmatprep.mubr.bf16.mxu0 0
      %808 = vmatmul.mubr.bf16.gmra.mxu0 %v653
      %v809 = vpop.f32.mrf.mxu0
      %v810 = vadd.f32 %v289, %v809
      %v811 = vpop.f32.mrf.mxu0
      %v812 = vadd.f32 %v289, %v811
      %v813 = vpop.f32.mrf.mxu0
      %v814 = vadd.f32 %v294, %v813
      %v815 = vpop.f32.mrf.mxu0
      %v816 = vadd.f32 %v294, %v815
      %817 = vmatprep.mubr.bf16.mxu0 0
      %818 = vmatmul.mubr.bf16.gmra.mxu0 %v656
      %v819 = vpop.f32.mrf.mxu0
      %v820 = vadd.f32 %v299, %v819
      %v821 = vpop.f32.mrf.mxu0
      %v822 = vadd.f32 %v299, %v821
      %v823 = vpop.f32.mrf.mxu0
      %v824 = vadd.f32 %v304, %v823
      %v825 = vpop.f32.mrf.mxu0
      %v826 = vadd.f32 %v304, %v825
      %827 = vmatprep.mubr.bf16.mxu0 0
      %828 = vmatmul.mubr.bf16.gmra.mxu0 %v659
      %v829 = vpop.f32.mrf.mxu0
      %v830 = vadd.f32 %v309, %v829
      %v831 = vpop.f32.mrf.mxu0
      %v832 = vadd.f32 %v309, %v831
      %v833 = vpop.f32.mrf.mxu0
      %v834 = vadd.f32 %v314, %v833
      %v835 = vpop.f32.mrf.mxu0
      %v836 = vadd.f32 %v314, %v835
      %837 = vmatprep.mubr.bf16.mxu0 0
      %838 = vmatmul.mubr.bf16.gmra.mxu0 %v662
      %v839 = vpop.f32.mrf.mxu0
      %v840 = vadd.f32 %v319, %v839
      %v841 = vpop.f32.mrf.mxu0
      %v842 = vadd.f32 %v319, %v841
      %v843 = vpop.f32.mrf.mxu0
      %v844 = vadd.f32 %v324, %v843
      %v845 = vpop.f32.mrf.mxu0
      %v846 = vadd.f32 %v324, %v845
      %847 = vmatprep.mubr.bf16.mxu0 0
      %848 = vmatmul.mubr.bf16.gmra.mxu0 %v665
      %v849 = vpop.f32.mrf.mxu0
      %v850 = vadd.f32 %v329, %v849
      %v851 = vpop.f32.mrf.mxu0
      %v852 = vadd.f32 %v329, %v851
      %v853 = vpop.f32.mrf.mxu0
      %v854 = vadd.f32 %v334, %v853
      %v855 = vpop.f32.mrf.mxu0
      %v856 = vadd.f32 %v334, %v855
      %857 = vmatprep.mubr.bf16.mxu0 0
      %858 = vmatmul.mubr.bf16.gmra.mxu0 %v668
      %v859 = vpop.f32.mrf.mxu0
      %v860 = vadd.f32 %v339, %v859
      %v861 = vpop.f32.mrf.mxu0
      %v862 = vadd.f32 %v339, %v861
      %v863 = vpop.f32.mrf.mxu0
      %v864 = vadd.f32 %v344, %v863
      %v865 = vpop.f32.mrf.mxu0
      %v866 = vadd.f32 %v344, %v865
      %867 = vmatprep.mubr.bf16.mxu0 0
      %868 = vmatmul.mubr.bf16.gmra.mxu0 %v671
      %v869 = vpop.f32.mrf.mxu0
      %v870 = vadd.f32 %v349, %v869
      %v871 = vpop.f32.mrf.mxu0
      %v872 = vadd.f32 %v349, %v871
      %v873 = vpop.f32.mrf.mxu0
      %v874 = vadd.f32 %v354, %v873
      %v875 = vpop.f32.mrf.mxu0
      %v876 = vadd.f32 %v354, %v875
      %877 = vmatprep.mubr.bf16.mxu0 0
      %878 = vmatmul.mubr.bf16.gmra.mxu0 %v674
      %v879 = vpop.f32.mrf.mxu0
      %v880 = vadd.f32 %v359, %v879
      %v881 = vpop.f32.mrf.mxu0
      %v882 = vadd.f32 %v359, %v881
      %v883 = vpop.f32.mrf.mxu0
      %v884 = vadd.f32 %v364, %v883
      %v885 = vpop.f32.mrf.mxu0
      %v886 = vadd.f32 %v364, %v885
      %887 = vmatprep.mubr.bf16.mxu0 0
      %888 = vmatmul.mubr.bf16.gmra.mxu0 %v677
      %v889 = vpop.f32.mrf.mxu0
      %v890 = vadd.f32 %v369, %v889
      %v891 = vpop.f32.mrf.mxu0
      %v892 = vadd.f32 %v369, %v891
      %v893 = vpop.f32.mrf.mxu0
      %v894 = vadd.f32 %v374, %v893
      %v895 = vpop.f32.mrf.mxu0
      %v896 = vadd.f32 %v374, %v895
      %897 = vmatprep.mubr.bf16.mxu0 0
      %898 = vmatmul.mubr.bf16.gmra.mxu0 %v680
      %v899 = vpop.f32.mrf.mxu0
      %v900 = vadd.f32 %v379, %v899
      %v901 = vpop.f32.mrf.mxu0
      %v902 = vadd.f32 %v379, %v901
      %v903 = vpop.f32.mrf.mxu0
      %v904 = vadd.f32 %v384, %v903
      %v905 = vpop.f32.mrf.mxu0
      %v906 = vadd.f32 %v384, %v905
      %907 = vmatprep.mubr.bf16.mxu0 0
      %908 = vmatmul.mubr.bf16.gmra.mxu0 %v683
      %v909 = vpop.f32.mrf.mxu0
      %v910 = vadd.f32 %v389, %v909
      %v911 = vpop.f32.mrf.mxu0
      %v912 = vadd.f32 %v389, %v911
      %v913 = vpop.f32.mrf.mxu0
      %v914 = vadd.f32 %v394, %v913
      %v915 = vpop.f32.mrf.mxu0
      %v916 = vadd.f32 %v394, %v915
      %917 = vmatprep.mubr.bf16.mxu0 0
      %918 = vmatmul.mubr.bf16.gmra.mxu0 %v686
      %v919 = vpop.f32.mrf.mxu0
      %v920 = vadd.f32 %v399, %v919
      %v921 = vpop.f32.mrf.mxu0
      %v922 = vadd.f32 %v399, %v921
      %v923 = vpop.f32.mrf.mxu0
      %v924 = vadd.f32 %v404, %v923
      %v925 = vpop.f32.mrf.mxu0
      %v926 = vadd.f32 %v404, %v925
      %927 = vmatprep.mubr.bf16.mxu0 0
      %928 = vmatmul.mubr.bf16.gmra.mxu0 %v689
      %v929 = vpop.f32.mrf.mxu0
      %v930 = vadd.f32 %v409, %v929
      %v931 = vpop.f32.mrf.mxu0
      %v932 = vadd.f32 %v409, %v931
      %v933 = vpop.f32.mrf.mxu0
      %v934 = vadd.f32 %v414, %v933
      %v935 = vpop.f32.mrf.mxu0
      %v936 = vadd.f32 %v414, %v935
      %937 = vmatprep.mubr.bf16.mxu0 0
      %938 = vmatmul.mubr.bf16.gmra.mxu0 %v692
      %v939 = vpop.f32.mrf.mxu0
      %v940 = vadd.f32 %v419, %v939
      %v941 = vpop.f32.mrf.mxu0
      %v942 = vadd.f32 %v419, %v941
      %v943 = vpop.f32.mrf.mxu0
      %v944 = vadd.f32 %v424, %v943
      %v945 = vpop.f32.mrf.mxu0
      %v946 = vadd.f32 %v424, %v945
      %947 = vmatprep.mubr.bf16.mxu0 0
      %948 = vmatmul.mubr.bf16.gmra.mxu0 %v695
      %v949 = vpop.f32.mrf.mxu0
      %v950 = vadd.f32 %v429, %v949
      %v951 = vpop.f32.mrf.mxu0
      %v952 = vadd.f32 %v429, %v951
      %v953 = vpop.f32.mrf.mxu0
      %v954 = vadd.f32 %v434, %v953
      %v955 = vpop.f32.mrf.mxu0
      %v956 = vadd.f32 %v434, %v955
      %957 = vmatprep.mubr.bf16.mxu0 0
      %958 = vmatmul.mubr.bf16.gmra.mxu0 %v698
      %v959 = vpop.f32.mrf.mxu0
      %v960 = vadd.f32 %v439, %v959
      %v961 = vpop.f32.mrf.mxu0
      %v962 = vadd.f32 %v439, %v961
      %v963 = vpop.f32.mrf.mxu0
      %v964 = vadd.f32 %v444, %v963
      %v965 = vpop.f32.mrf.mxu0
      %v966 = vadd.f32 %v444, %v965
      %967 = vdwg.mxu0
      %968 = vmatprep.subr.bf16.mxu0 0
      %969 = vmatpush1.bf16.xpose.msra.mxu0 %v770
      %970 = vmatprep.subr.bf16.mxu0 0
      %971 = vmatpush1.bf16.xpose.msra.mxu0 %v767
      %972 = vmatprep.subr.bf16.mxu0 0
      %973 = vmatpush1.bf16.xpose.msra.mxu0 %v764
      %974 = vmatprep.subr.bf16.mxu0 0
      %975 = vmatpush1.bf16.xpose.msra.mxu0 %v761
      %976 = vmatprep.subr.bf16.mxu0 0
      %977 = vmatpush1.bf16.xpose.msra.mxu0 %v758
      %978 = vmatprep.subr.bf16.mxu0 0
      %979 = vmatpush1.bf16.xpose.msra.mxu0 %v755
      %980 = vmatprep.subr.bf16.mxu0 0
      %981 = vmatpush1.bf16.xpose.msra.mxu0 %v752
      %982 = vmatprep.subr.bf16.mxu0 0
      %983 = vmatpush1.bf16.xpose.msra.mxu0 %v749
      %984 = vmatprep.subr.bf16.mxu0 0
      %985 = vmatpush2.bf16.xpose.msra.mxu0 0
      %986 = vmatprep.subr.bf16.mxu0 0
      %987 = vmatpush2.bf16.xpose.msra.mxu0 0
      %988 = vmatprep.subr.bf16.mxu0 0
      %989 = vmatpush2.bf16.xpose.msra.mxu0 0
      %990 = vmatprep.subr.bf16.mxu0 0
      %991 = vmatpush2.bf16.xpose.msra.mxu0 0
      %992 = vmatprep.subr.bf16.mxu0 0
      %993 = vmatpush2.bf16.xpose.msra.mxu0 0
      %994 = vmatprep.subr.bf16.mxu0 0
      %995 = vmatpush2.bf16.xpose.msra.mxu0 0
      %996 = vmatprep.subr.bf16.mxu0 0
      %997 = vmatpush2.bf16.xpose.msra.mxu0 0
      %998 = vmatprep.subr.bf16.mxu0 0
      %999 = vmatpush2.bf16.xpose.msra.mxu0 %v773
      %1000 = vmatprep.mubr.bf16.mxu0 0
      %1001 = vmatmul.mubr.bf16.gmra.mxu0 %v653
      %v1002 = vpop.f32.mrf.mxu0
      %v1003 = vadd.f32 %v289, %v1002
      %v1004 = vpop.f32.mrf.mxu0
      %v1005 = vadd.f32 %v289, %v1004
      %v1006 = vpop.f32.mrf.mxu0
      %v1007 = vadd.f32 %v294, %v1006
      %v1008 = vpop.f32.mrf.mxu0
      %v1009 = vadd.f32 %v294, %v1008
      %1010 = vmatprep.mubr.bf16.mxu0 0
      %1011 = vmatmul.mubr.bf16.gmra.mxu0 %v656
      %v1012 = vpop.f32.mrf.mxu0
      %v1013 = vadd.f32 %v299, %v1012
      %v1014 = vpop.f32.mrf.mxu0
      %v1015 = vadd.f32 %v299, %v1014
      %v1016 = vpop.f32.mrf.mxu0
      %v1017 = vadd.f32 %v304, %v1016
      %v1018 = vpop.f32.mrf.mxu0
      %v1019 = vadd.f32 %v304, %v1018
      %1020 = vmatprep.mubr.bf16.mxu0 0
      %1021 = vmatmul.mubr.bf16.gmra.mxu0 %v659
      %v1022 = vpop.f32.mrf.mxu0
      %v1023 = vadd.f32 %v309, %v1022
      %v1024 = vpop.f32.mrf.mxu0
      %v1025 = vadd.f32 %v309, %v1024
      %v1026 = vpop.f32.mrf.mxu0
      %v1027 = vadd.f32 %v314, %v1026
      %v1028 = vpop.f32.mrf.mxu0
      %v1029 = vadd.f32 %v314, %v1028
      %1030 = vmatprep.mubr.bf16.mxu0 0
      %1031 = vmatmul.mubr.bf16.gmra.mxu0 %v662
      %v1032 = vpop.f32.mrf.mxu0
      %v1033 = vadd.f32 %v319, %v1032
      %v1034 = vpop.f32.mrf.mxu0
      %v1035 = vadd.f32 %v319, %v1034
      %v1036 = vpop.f32.mrf.mxu0
      %v1037 = vadd.f32 %v324, %v1036
      %v1038 = vpop.f32.mrf.mxu0
      %v1039 = vadd.f32 %v324, %v1038
      %1040 = vmatprep.mubr.bf16.mxu0 0
      %1041 = vmatmul.mubr.bf16.gmra.mxu0 %v665
      %v1042 = vpop.f32.mrf.mxu0
      %v1043 = vadd.f32 %v329, %v1042
      %v1044 = vpop.f32.mrf.mxu0
      %v1045 = vadd.f32 %v329, %v1044
      %v1046 = vpop.f32.mrf.mxu0
      %v1047 = vadd.f32 %v334, %v1046
      %v1048 = vpop.f32.mrf.mxu0
      %v1049 = vadd.f32 %v334, %v1048
      %1050 = vmatprep.mubr.bf16.mxu0 0
      %1051 = vmatmul.mubr.bf16.gmra.mxu0 %v668
      %v1052 = vpop.f32.mrf.mxu0
      %v1053 = vadd.f32 %v339, %v1052
      %v1054 = vpop.f32.mrf.mxu0
      %v1055 = vadd.f32 %v339, %v1054
      %v1056 = vpop.f32.mrf.mxu0
      %v1057 = vadd.f32 %v344, %v1056
      %v1058 = vpop.f32.mrf.mxu0
      %v1059 = vadd.f32 %v344, %v1058
      %1060 = vmatprep.mubr.bf16.mxu0 0
      %1061 = vmatmul.mubr.bf16.gmra.mxu0 %v671
      %v1062 = vpop.f32.mrf.mxu0
      %v1063 = vadd.f32 %v349, %v1062
      %v1064 = vpop.f32.mrf.mxu0
      %v1065 = vadd.f32 %v349, %v1064
      %v1066 = vpop.f32.mrf.mxu0
      %v1067 = vadd.f32 %v354, %v1066
      %v1068 = vpop.f32.mrf.mxu0
      %v1069 = vadd.f32 %v354, %v1068
      %1070 = vmatprep.mubr.bf16.mxu0 0
      %1071 = vmatmul.mubr.bf16.gmra.mxu0 %v674
      %v1072 = vpop.f32.mrf.mxu0
      %v1073 = vadd.f32 %v359, %v1072
      %v1074 = vpop.f32.mrf.mxu0
      %v1075 = vadd.f32 %v359, %v1074
      %v1076 = vpop.f32.mrf.mxu0
      %v1077 = vadd.f32 %v364, %v1076
      %v1078 = vpop.f32.mrf.mxu0
      %v1079 = vadd.f32 %v364, %v1078
      %1080 = vmatprep.mubr.bf16.mxu0 0
      %1081 = vmatmul.mubr.bf16.gmra.mxu0 %v677
      %v1082 = vpop.f32.mrf.mxu0
      %v1083 = vadd.f32 %v369, %v1082
      %v1084 = vpop.f32.mrf.mxu0
      %v1085 = vadd.f32 %v369, %v1084
      %v1086 = vpop.f32.mrf.mxu0
      %v1087 = vadd.f32 %v374, %v1086
      %v1088 = vpop.f32.mrf.mxu0
      %v1089 = vadd.f32 %v374, %v1088
      %1090 = vmatprep.mubr.bf16.mxu0 0
      %1091 = vmatmul.mubr.bf16.gmra.mxu0 %v680
      %v1092 = vpop.f32.mrf.mxu0
      %v1093 = vadd.f32 %v379, %v1092
      %v1094 = vpop.f32.mrf.mxu0
      %v1095 = vadd.f32 %v379, %v1094
      %v1096 = vpop.f32.mrf.mxu0
      %v1097 = vadd.f32 %v384, %v1096
      %v1098 = vpop.f32.mrf.mxu0
      %v1099 = vadd.f32 %v384, %v1098
      %1100 = vmatprep.mubr.bf16.mxu0 0
      %1101 = vmatmul.mubr.bf16.gmra.mxu0 %v683
      %v1102 = vpop.f32.mrf.mxu0
      %v1103 = vadd.f32 %v389, %v1102
      %v1104 = vpop.f32.mrf.mxu0
      %v1105 = vadd.f32 %v389, %v1104
      %v1106 = vpop.f32.mrf.mxu0
      %v1107 = vadd.f32 %v394, %v1106
      %v1108 = vpop.f32.mrf.mxu0
      %v1109 = vadd.f32 %v394, %v1108
      %1110 = vmatprep.mubr.bf16.mxu0 0
      %1111 = vmatmul.mubr.bf16.gmra.mxu0 %v686
      %v1112 = vpop.f32.mrf.mxu0
      %v1113 = vadd.f32 %v399, %v1112
      %v1114 = vpop.f32.mrf.mxu0
      %v1115 = vadd.f32 %v399, %v1114
      %v1116 = vpop.f32.mrf.mxu0
      %v1117 = vadd.f32 %v404, %v1116
      %v1118 = vpop.f32.mrf.mxu0
      %v1119 = vadd.f32 %v404, %v1118
      %1120 = vmatprep.mubr.bf16.mxu0 0
      %1121 = vmatmul.mubr.bf16.gmra.mxu0 %v689
      %v1122 = vpop.f32.mrf.mxu0
      %v1123 = vadd.f32 %v409, %v1122
      %v1124 = vpop.f32.mrf.mxu0
      %v1125 = vadd.f32 %v409, %v1124
      %v1126 = vpop.f32.mrf.mxu0
      %v1127 = vadd.f32 %v414, %v1126
      %v1128 = vpop.f32.mrf.mxu0
      %v1129 = vadd.f32 %v414, %v1128
      %1130 = vmatprep.mubr.bf16.mxu0 0
      %1131 = vmatmul.mubr.bf16.gmra.mxu0 %v692
      %v1132 = vpop.f32.mrf.mxu0
      %v1133 = vadd.f32 %v419, %v1132
      %v1134 = vpop.f32.mrf.mxu0
      %v1135 = vadd.f32 %v419, %v1134
      %v1136 = vpop.f32.mrf.mxu0
      %v1137 = vadd.f32 %v424, %v1136
      %v1138 = vpop.f32.mrf.mxu0
      %v1139 = vadd.f32 %v424, %v1138
      %1140 = vmatprep.mubr.bf16.mxu0 0
      %1141 = vmatmul.mubr.bf16.gmra.mxu0 %v695
      %v1142 = vpop.f32.mrf.mxu0
      %v1143 = vadd.f32 %v429, %v1142
      %v1144 = vpop.f32.mrf.mxu0
      %v1145 = vadd.f32 %v429, %v1144
      %v1146 = vpop.f32.mrf.mxu0
      %v1147 = vadd.f32 %v434, %v1146
      %v1148 = vpop.f32.mrf.mxu0
      %v1149 = vadd.f32 %v434, %v1148
      %1150 = vmatprep.mubr.bf16.mxu0 0
      %1151 = vmatmul.mubr.bf16.gmra.mxu0 %v698
      %v1152 = vpop.f32.mrf.mxu0
      %v1153 = vadd.f32 %v439, %v1152
      %v1154 = vpop.f32.mrf.mxu0
      %v1155 = vadd.f32 %v439, %v1154
      %v1156 = vpop.f32.mrf.mxu0
      %v1157 = vadd.f32 %v444, %v1156
      %v1158 = vpop.f32.mrf.mxu0
      %v1159 = vadd.f32 %v444, %v1158
      %1160 = vdwg.mxu0
      %v1161 = vmax.f32 %v810, 0.0
      %v1162 = vmax.f32 %v812, 0.0
      %v1163 = vmax.f32 %v1003, 0.0
      %v1164 = vmax.f32 %v1005, 0.0
      %v1165 = vmax.f32 %v814, 0.0
      %v1166 = vmax.f32 %v816, 0.0
      %v1167 = vmax.f32 %v1007, 0.0
      %v1168 = vmax.f32 %v1009, 0.0
      %v1169 = vmax.f32 %v820, 0.0
      %v1170 = vmax.f32 %v822, 0.0
      %v1171 = vmax.f32 %v1013, 0.0
      %v1172 = vmax.f32 %v1015, 0.0
      %v1173 = vmax.f32 %v824, 0.0
      %v1174 = vmax.f32 %v826, 0.0
      %v1175 = vmax.f32 %v1017, 0.0
      %v1176 = vmax.f32 %v1019, 0.0
      %v1177 = vmax.f32 %v830, 0.0
      %v1178 = vmax.f32 %v832, 0.0
      %v1179 = vmax.f32 %v1023, 0.0
      %v1180 = vmax.f32 %v1025, 0.0
      %v1181 = vmax.f32 %v834, 0.0
      %v1182 = vmax.f32 %v836, 0.0
      %v1183 = vmax.f32 %v1027, 0.0
      %v1184 = vmax.f32 %v1029, 0.0
      %v1185 = vmax.f32 %v840, 0.0
      %v1186 = vmax.f32 %v842, 0.0
      %v1187 = vmax.f32 %v1033, 0.0
      %v1188 = vmax.f32 %v1035, 0.0
      %v1189 = vmax.f32 %v844, 0.0
      %v1190 = vmax.f32 %v846, 0.0
      %v1191 = vmax.f32 %v1037, 0.0
      %v1192 = vmax.f32 %v1039, 0.0
      %v1193 = vmax.f32 %v850, 0.0
      %v1194 = vmax.f32 %v852, 0.0
      %v1195 = vmax.f32 %v1043, 0.0
      %v1196 = vmax.f32 %v1045, 0.0
      %v1197 = vmax.f32 %v854, 0.0
      %v1198 = vmax.f32 %v856, 0.0
      %v1199 = vmax.f32 %v1047, 0.0
      %v1200 = vmax.f32 %v1049, 0.0
      %v1201 = vmax.f32 %v860, 0.0
      %v1202 = vmax.f32 %v862, 0.0
      %v1203 = vmax.f32 %v1053, 0.0
      %v1204 = vmax.f32 %v1055, 0.0
      %v1205 = vmax.f32 %v864, 0.0
      %v1206 = vmax.f32 %v866, 0.0
      %v1207 = vmax.f32 %v1057, 0.0
      %v1208 = vmax.f32 %v1059, 0.0
      %v1209 = vmax.f32 %v870, 0.0
      %v1210 = vmax.f32 %v872, 0.0
      %v1211 = vmax.f32 %v1063, 0.0
      %v1212 = vmax.f32 %v1065, 0.0
      %v1213 = vmax.f32 %v874, 0.0
      %v1214 = vmax.f32 %v876, 0.0
      %v1215 = vmax.f32 %v1067, 0.0
      %v1216 = vmax.f32 %v1069, 0.0
      %v1217 = vmax.f32 %v880, 0.0
      %v1218 = vmax.f32 %v882, 0.0
      %v1219 = vmax.f32 %v1073, 0.0
      %v1220 = vmax.f32 %v1075, 0.0
      %v1221 = vmax.f32 %v884, 0.0
      %v1222 = vmax.f32 %v886, 0.0
      %v1223 = vmax.f32 %v1077, 0.0
      %v1224 = vmax.f32 %v1079, 0.0
      %v1225 = vmax.f32 %v890, 0.0
      %v1226 = vmax.f32 %v892, 0.0
      %v1227 = vmax.f32 %v1083, 0.0
      %v1228 = vmax.f32 %v1085, 0.0
      %v1229 = vmax.f32 %v894, 0.0
      %v1230 = vmax.f32 %v896, 0.0
      %v1231 = vmax.f32 %v1087, 0.0
      %v1232 = vmax.f32 %v1089, 0.0
      %v1233 = vmax.f32 %v900, 0.0
      %v1234 = vmax.f32 %v902, 0.0
      %v1235 = vmax.f32 %v1093, 0.0
      %v1236 = vmax.f32 %v1095, 0.0
      %v1237 = vmax.f32 %v904, 0.0
      %v1238 = vmax.f32 %v906, 0.0
      %v1239 = vmax.f32 %v1097, 0.0
      %v1240 = vmax.f32 %v1099, 0.0
      %v1241 = vmax.f32 %v910, 0.0
      %v1242 = vmax.f32 %v912, 0.0
      %v1243 = vmax.f32 %v1103, 0.0
      %v1244 = vmax.f32 %v1105, 0.0
      %v1245 = vmax.f32 %v914, 0.0
      %v1246 = vmax.f32 %v916, 0.0
      %v1247 = vmax.f32 %v1107, 0.0
      %v1248 = vmax.f32 %v1109, 0.0
      %v1249 = vmax.f32 %v920, 0.0
      %v1250 = vmax.f32 %v922, 0.0
      %v1251 = vmax.f32 %v1113, 0.0
      %v1252 = vmax.f32 %v1115, 0.0
      %v1253 = vmax.f32 %v924, 0.0
      %v1254 = vmax.f32 %v926, 0.0
      %v1255 = vmax.f32 %v1117, 0.0
      %v1256 = vmax.f32 %v1119, 0.0
      %v1257 = vmax.f32 %v930, 0.0
      %v1258 = vmax.f32 %v932, 0.0
      %v1259 = vmax.f32 %v1123, 0.0
      %v1260 = vmax.f32 %v1125, 0.0
      %v1261 = vmax.f32 %v934, 0.0
      %v1262 = vmax.f32 %v936, 0.0
      %v1263 = vmax.f32 %v1127, 0.0
      %v1264 = vmax.f32 %v1129, 0.0
      %v1265 = vmax.f32 %v940, 0.0
      %v1266 = vmax.f32 %v942, 0.0
      %v1267 = vmax.f32 %v1133, 0.0
      %v1268 = vmax.f32 %v1135, 0.0
      %v1269 = vmax.f32 %v944, 0.0
      %v1270 = vmax.f32 %v946, 0.0
      %v1271 = vmax.f32 %v1137, 0.0
      %v1272 = vmax.f32 %v1139, 0.0
      %v1273 = vmax.f32 %v950, 0.0
      %v1274 = vmax.f32 %v952, 0.0
      %v1275 = vmax.f32 %v1143, 0.0
      %v1276 = vmax.f32 %v1145, 0.0
      %v1277 = vmax.f32 %v954, 0.0
      %v1278 = vmax.f32 %v956, 0.0
      %v1279 = vmax.f32 %v1147, 0.0
      %v1280 = vmax.f32 %v1149, 0.0
      %v1281 = vmax.f32 %v960, 0.0
      %v1282 = vmax.f32 %v962, 0.0
      %v1283 = vmax.f32 %v1153, 0.0
      %v1284 = vmax.f32 %v1155, 0.0
      %v1285 = vmax.f32 %v964, 0.0
      %v1286 = vmax.f32 %v966, 0.0
      %v1287 = vmax.f32 %v1157, 0.0
      %v1288 = vmax.f32 %v1159, 0.0
      %v1289 = vpack.c.bf16 %v1165, %v1161
      %v1290 = vpack.c.bf16 %v1166, %v1162
      %v1291 = vpack.c.bf16 %v1167, %v1163
      %v1292 = vpack.c.bf16 %v1168, %v1164
      %v1293 = vpack.c.bf16 %v1173, %v1169
      %v1294 = vpack.c.bf16 %v1174, %v1170
      %v1295 = vpack.c.bf16 %v1175, %v1171
      %v1296 = vpack.c.bf16 %v1176, %v1172
      %v1297 = vpack.c.bf16 %v1181, %v1177
      %v1298 = vpack.c.bf16 %v1182, %v1178
      %v1299 = vpack.c.bf16 %v1183, %v1179
      %v1300 = vpack.c.bf16 %v1184, %v1180
      %v1301 = vpack.c.bf16 %v1189, %v1185
      %v1302 = vpack.c.bf16 %v1190, %v1186
      %v1303 = vpack.c.bf16 %v1191, %v1187
      %v1304 = vpack.c.bf16 %v1192, %v1188
      %v1305 = vpack.c.bf16 %v1197, %v1193
      %v1306 = vpack.c.bf16 %v1198, %v1194
      %v1307 = vpack.c.bf16 %v1199, %v1195
      %v1308 = vpack.c.bf16 %v1200, %v1196
      %v1309 = vpack.c.bf16 %v1205, %v1201
      %v1310 = vpack.c.bf16 %v1206, %v1202
      %v1311 = vpack.c.bf16 %v1207, %v1203
      %v1312 = vpack.c.bf16 %v1208, %v1204
      %v1313 = vpack.c.bf16 %v1213, %v1209
      %v1314 = vpack.c.bf16 %v1214, %v1210
      %v1315 = vpack.c.bf16 %v1215, %v1211
      %v1316 = vpack.c.bf16 %v1216, %v1212
      %v1317 = vpack.c.bf16 %v1221, %v1217
      %v1318 = vpack.c.bf16 %v1222, %v1218
      %v1319 = vpack.c.bf16 %v1223, %v1219
      %v1320 = vpack.c.bf16 %v1224, %v1220
      %v1321 = vpack.c.bf16 %v1229, %v1225
      %v1322 = vpack.c.bf16 %v1230, %v1226
      %v1323 = vpack.c.bf16 %v1231, %v1227
      %v1324 = vpack.c.bf16 %v1232, %v1228
      %v1325 = vpack.c.bf16 %v1237, %v1233
      %v1326 = vpack.c.bf16 %v1238, %v1234
      %v1327 = vpack.c.bf16 %v1239, %v1235
      %v1328 = vpack.c.bf16 %v1240, %v1236
      %v1329 = vpack.c.bf16 %v1245, %v1241
      %v1330 = vpack.c.bf16 %v1246, %v1242
      %v1331 = vpack.c.bf16 %v1247, %v1243
      %v1332 = vpack.c.bf16 %v1248, %v1244
      %v1333 = vpack.c.bf16 %v1253, %v1249
      %v1334 = vpack.c.bf16 %v1254, %v1250
      %v1335 = vpack.c.bf16 %v1255, %v1251
      %v1336 = vpack.c.bf16 %v1256, %v1252
      %v1337 = vpack.c.bf16 %v1261, %v1257
      %v1338 = vpack.c.bf16 %v1262, %v1258
      %v1339 = vpack.c.bf16 %v1263, %v1259
      %v1340 = vpack.c.bf16 %v1264, %v1260
      %v1341 = vpack.c.bf16 %v1269, %v1265
      %v1342 = vpack.c.bf16 %v1270, %v1266
      %v1343 = vpack.c.bf16 %v1271, %v1267
      %v1344 = vpack.c.bf16 %v1272, %v1268
      %v1345 = vpack.c.bf16 %v1277, %v1273
      %v1346 = vpack.c.bf16 %v1278, %v1274
      %v1347 = vpack.c.bf16 %v1279, %v1275
      %v1348 = vpack.c.bf16 %v1280, %v1276
      %v1349 = vpack.c.bf16 %v1285, %v1281
      %v1350 = vpack.c.bf16 %v1286, %v1282
      %v1351 = vpack.c.bf16 %v1287, %v1283
      %v1352 = vpack.c.bf16 %v1288, %v1284
      %v1417 = vunpack.c.l.b16 %v1289
      %v1418 = vunpack.c.l.b16 %v1290
      %v1419 = vunpack.c.l.b16 %v1291
      %v1420 = vunpack.c.l.b16 %v1292
      %v1421 = vunpack.c.h.b16 %v1289
      %v1422 = vunpack.c.h.b16 %v1290
      %v1423 = vunpack.c.h.b16 %v1291
      %v1424 = vunpack.c.h.b16 %v1292
      %v1425 = vunpack.c.l.b16 %v1293
      %v1426 = vunpack.c.l.b16 %v1294
      %v1427 = vunpack.c.l.b16 %v1295
      %v1428 = vunpack.c.l.b16 %v1296
      %v1429 = vunpack.c.h.b16 %v1293
      %v1430 = vunpack.c.h.b16 %v1294
      %v1431 = vunpack.c.h.b16 %v1295
      %v1432 = vunpack.c.h.b16 %v1296
      %v1433 = vunpack.c.l.b16 %v1297
      %v1434 = vunpack.c.l.b16 %v1298
      %v1435 = vunpack.c.l.b16 %v1299
      %v1436 = vunpack.c.l.b16 %v1300
      %v1437 = vunpack.c.h.b16 %v1297
      %v1438 = vunpack.c.h.b16 %v1298
      %v1439 = vunpack.c.h.b16 %v1299
      %v1440 = vunpack.c.h.b16 %v1300
      %v1441 = vunpack.c.l.b16 %v1301
      %v1442 = vunpack.c.l.b16 %v1302
      %v1443 = vunpack.c.l.b16 %v1303
      %v1444 = vunpack.c.l.b16 %v1304
      %v1445 = vunpack.c.h.b16 %v1301
      %v1446 = vunpack.c.h.b16 %v1302
      %v1447 = vunpack.c.h.b16 %v1303
      %v1448 = vunpack.c.h.b16 %v1304
      %v1449 = vunpack.c.l.b16 %v1305
      %v1450 = vunpack.c.l.b16 %v1306
      %v1451 = vunpack.c.l.b16 %v1307
      %v1452 = vunpack.c.l.b16 %v1308
      %v1453 = vunpack.c.h.b16 %v1305
      %v1454 = vunpack.c.h.b16 %v1306
      %v1455 = vunpack.c.h.b16 %v1307
      %v1456 = vunpack.c.h.b16 %v1308
      %v1457 = vunpack.c.l.b16 %v1309
      %v1458 = vunpack.c.l.b16 %v1310
      %v1459 = vunpack.c.l.b16 %v1311
      %v1460 = vunpack.c.l.b16 %v1312
      %v1461 = vunpack.c.h.b16 %v1309
      %v1462 = vunpack.c.h.b16 %v1310
      %v1463 = vunpack.c.h.b16 %v1311
      %v1464 = vunpack.c.h.b16 %v1312
      %v1465 = vunpack.c.l.b16 %v1313
      %v1466 = vunpack.c.l.b16 %v1314
      %v1467 = vunpack.c.l.b16 %v1315
      %v1468 = vunpack.c.l.b16 %v1316
      %v1469 = vunpack.c.h.b16 %v1313
      %v1470 = vunpack.c.h.b16 %v1314
      %v1471 = vunpack.c.h.b16 %v1315
      %v1472 = vunpack.c.h.b16 %v1316
      %v1473 = vunpack.c.l.b16 %v1317
      %v1474 = vunpack.c.l.b16 %v1318
      %v1475 = vunpack.c.l.b16 %v1319
      %v1476 = vunpack.c.l.b16 %v1320
      %v1477 = vunpack.c.h.b16 %v1317
      %v1478 = vunpack.c.h.b16 %v1318
      %v1479 = vunpack.c.h.b16 %v1319
      %v1480 = vunpack.c.h.b16 %v1320
      %v1481 = vunpack.c.l.b16 %v1321
      %v1482 = vunpack.c.l.b16 %v1322
      %v1483 = vunpack.c.l.b16 %v1323
      %v1484 = vunpack.c.l.b16 %v1324
      %v1485 = vunpack.c.h.b16 %v1321
      %v1486 = vunpack.c.h.b16 %v1322
      %v1487 = vunpack.c.h.b16 %v1323
      %v1488 = vunpack.c.h.b16 %v1324
      %v1489 = vunpack.c.l.b16 %v1325
      %v1490 = vunpack.c.l.b16 %v1326
      %v1491 = vunpack.c.l.b16 %v1327
      %v1492 = vunpack.c.l.b16 %v1328
      %v1493 = vunpack.c.h.b16 %v1325
      %v1494 = vunpack.c.h.b16 %v1326
      %v1495 = vunpack.c.h.b16 %v1327
      %v1496 = vunpack.c.h.b16 %v1328
      %v1497 = vunpack.c.l.b16 %v1329
      %v1498 = vunpack.c.l.b16 %v1330
      %v1499 = vunpack.c.l.b16 %v1331
      %v1500 = vunpack.c.l.b16 %v1332
      %v1501 = vunpack.c.h.b16 %v1329
      %v1502 = vunpack.c.h.b16 %v1330
      %v1503 = vunpack.c.h.b16 %v1331
      %v1504 = vunpack.c.h.b16 %v1332
      %v1505 = vunpack.c.l.b16 %v1333
      %v1506 = vunpack.c.l.b16 %v1334
      %v1507 = vunpack.c.l.b16 %v1335
      %v1508 = vunpack.c.l.b16 %v1336
      %v1509 = vunpack.c.h.b16 %v1333
      %v1510 = vunpack.c.h.b16 %v1334
      %v1511 = vunpack.c.h.b16 %v1335
      %v1512 = vunpack.c.h.b16 %v1336
      %v1513 = vunpack.c.l.b16 %v1337
      %v1514 = vunpack.c.l.b16 %v1338
      %v1515 = vunpack.c.l.b16 %v1339
      %v1516 = vunpack.c.l.b16 %v1340
      %v1517 = vunpack.c.h.b16 %v1337
      %v1518 = vunpack.c.h.b16 %v1338
      %v1519 = vunpack.c.h.b16 %v1339
      %v1520 = vunpack.c.h.b16 %v1340
      %v1521 = vunpack.c.l.b16 %v1341
      %v1522 = vunpack.c.l.b16 %v1342
      %v1523 = vunpack.c.l.b16 %v1343
      %v1524 = vunpack.c.l.b16 %v1344
      %v1525 = vunpack.c.h.b16 %v1341
      %v1526 = vunpack.c.h.b16 %v1342
      %v1527 = vunpack.c.h.b16 %v1343
      %v1528 = vunpack.c.h.b16 %v1344
      %v1529 = vunpack.c.l.b16 %v1345
      %v1530 = vunpack.c.l.b16 %v1346
      %v1531 = vunpack.c.l.b16 %v1347
      %v1532 = vunpack.c.l.b16 %v1348
      %v1533 = vunpack.c.h.b16 %v1345
      %v1534 = vunpack.c.h.b16 %v1346
      %v1535 = vunpack.c.h.b16 %v1347
      %v1536 = vunpack.c.h.b16 %v1348
      %v1537 = vunpack.c.l.b16 %v1349
      %v1538 = vunpack.c.l.b16 %v1350
      %v1539 = vunpack.c.l.b16 %v1351
      %v1540 = vunpack.c.l.b16 %v1352
      %v1541 = vunpack.c.h.b16 %v1349
      %v1542 = vunpack.c.h.b16 %v1350
      %v1543 = vunpack.c.h.b16 %v1351
      %v1544 = vunpack.c.h.b16 %v1352
      %v1545 = vpack.c.b16 %v1418, %v1417
      %v1546 = vpack.c.b16 %v1420, %v1419
      %v1547 = vpack.c.b16 %v1422, %v1421
      %v1548 = vpack.c.b16 %v1424, %v1423
      %v1549 = vpack.c.b16 %v1426, %v1425
      %v1550 = vpack.c.b16 %v1428, %v1427
      %v1551 = vpack.c.b16 %v1430, %v1429
      %v1552 = vpack.c.b16 %v1432, %v1431
      %v1553 = vpack.c.b16 %v1434, %v1433
      %v1554 = vpack.c.b16 %v1436, %v1435
      %v1555 = vpack.c.b16 %v1438, %v1437
      %v1556 = vpack.c.b16 %v1440, %v1439
      %v1557 = vpack.c.b16 %v1442, %v1441
      %v1558 = vpack.c.b16 %v1444, %v1443
      %v1559 = vpack.c.b16 %v1446, %v1445
      %v1560 = vpack.c.b16 %v1448, %v1447
      %v1561 = vpack.c.b16 %v1450, %v1449
      %v1562 = vpack.c.b16 %v1452, %v1451
      %v1563 = vpack.c.b16 %v1454, %v1453
      %v1564 = vpack.c.b16 %v1456, %v1455
      %v1565 = vpack.c.b16 %v1458, %v1457
      %v1566 = vpack.c.b16 %v1460, %v1459
      %v1567 = vpack.c.b16 %v1462, %v1461
      %v1568 = vpack.c.b16 %v1464, %v1463
      %v1569 = vpack.c.b16 %v1466, %v1465
      %v1570 = vpack.c.b16 %v1468, %v1467
      %v1571 = vpack.c.b16 %v1470, %v1469
      %v1572 = vpack.c.b16 %v1472, %v1471
      %v1573 = vpack.c.b16 %v1474, %v1473
      %v1574 = vpack.c.b16 %v1476, %v1475
      %v1575 = vpack.c.b16 %v1478, %v1477
      %v1576 = vpack.c.b16 %v1480, %v1479
      %v1577 = vpack.c.b16 %v1482, %v1481
      %v1578 = vpack.c.b16 %v1484, %v1483
      %v1579 = vpack.c.b16 %v1486, %v1485
      %v1580 = vpack.c.b16 %v1488, %v1487
      %v1581 = vpack.c.b16 %v1490, %v1489
      %v1582 = vpack.c.b16 %v1492, %v1491
      %v1583 = vpack.c.b16 %v1494, %v1493
      %v1584 = vpack.c.b16 %v1496, %v1495
      %v1585 = vpack.c.b16 %v1498, %v1497
      %v1586 = vpack.c.b16 %v1500, %v1499
      %v1587 = vpack.c.b16 %v1502, %v1501
      %v1588 = vpack.c.b16 %v1504, %v1503
      %v1589 = vpack.c.b16 %v1506, %v1505
      %v1590 = vpack.c.b16 %v1508, %v1507
      %v1591 = vpack.c.b16 %v1510, %v1509
      %v1592 = vpack.c.b16 %v1512, %v1511
      %v1593 = vpack.c.b16 %v1514, %v1513
      %v1594 = vpack.c.b16 %v1516, %v1515
      %v1595 = vpack.c.b16 %v1518, %v1517
      %v1596 = vpack.c.b16 %v1520, %v1519
      %v1597 = vpack.c.b16 %v1522, %v1521
      %v1598 = vpack.c.b16 %v1524, %v1523
      %v1599 = vpack.c.b16 %v1526, %v1525
      %v1600 = vpack.c.b16 %v1528, %v1527
      %v1601 = vpack.c.b16 %v1530, %v1529
      %v1602 = vpack.c.b16 %v1532, %v1531
      %v1603 = vpack.c.b16 %v1534, %v1533
      %v1604 = vpack.c.b16 %v1536, %v1535
      %v1605 = vpack.c.b16 %v1538, %v1537
      %v1606 = vpack.c.b16 %v1540, %v1539
      %v1607 = vpack.c.b16 %v1542, %v1541
      %v1608 = vpack.c.b16 %v1544, %v1543
      %1673 = vst [vmem:[%s170] sm:$0xff] %v1545
      %vm1674 = vcmask 1043456
      %vm1675 = vcmask 130052
      %vm1676 = vmor %vm1675, %vm1674
      %1677 = vst.msk [vmem:[%s170 + $0x8] sm:$0xff] %vm1676, %v1546
      %1678 = vst [vmem:[%s170 + $0x10] sm:$0xff] %v1547
      %1679 = vst.msk [vmem:[%s170 + $0x18] sm:$0xff] %vm1676, %v1548
      %1680 = vst [vmem:[%s170 + $0x20] sm:$0xff] %v1549
      %1681 = vst.msk [vmem:[%s170 + $0x28] sm:$0xff] %vm1676, %v1550
      %1682 = vst [vmem:[%s170 + $0x30] sm:$0xff] %v1551
      %1683 = vst.msk [vmem:[%s170 + $0x38] sm:$0xff] %vm1676, %v1552
      %1684 = vst [vmem:[%s170 + $0x40] sm:$0xff] %v1553
      %1685 = vst.msk [vmem:[%s170 + $0x48] sm:$0xff] %vm1676, %v1554
      %1686 = vst [vmem:[%s170 + $0x50] sm:$0xff] %v1555
      %1687 = vst.msk [vmem:[%s170 + $0x58] sm:$0xff] %vm1676, %v1556
      %1688 = vst [vmem:[%s170 + $0x60] sm:$0xff] %v1557
      %1689 = vst.msk [vmem:[%s170 + $0x68] sm:$0xff] %vm1676, %v1558
      %1690 = vst [vmem:[%s170 + $0x70] sm:$0xff] %v1559
      %1691 = vst.msk [vmem:[%s170 + $0x78] sm:$0xff] %vm1676, %v1560
      %1692 = vst [vmem:[%s170 + $0x80] sm:$0xff] %v1561
      %1693 = vst.msk [vmem:[%s170 + $0x88] sm:$0xff] %vm1676, %v1562
      %1694 = vst [vmem:[%s170 + $0x90] sm:$0xff] %v1563
      %1695 = vst.msk [vmem:[%s170 + $0x98] sm:$0xff] %vm1676, %v1564
      %1696 = vst [vmem:[%s170 + $0xa0] sm:$0xff] %v1565
      %1697 = vst.msk [vmem:[%s170 + $0xa8] sm:$0xff] %vm1676, %v1566
      %1698 = vst [vmem:[%s170 + $0xb0] sm:$0xff] %v1567
      %1699 = vst.msk [vmem:[%s170 + $0xb8] sm:$0xff] %vm1676, %v1568
      %1700 = vst [vmem:[%s170 + $0xc0] sm:$0xff] %v1569
      %1701 = vst.msk [vmem:[%s170 + $0xc8] sm:$0xff] %vm1676, %v1570
      %1702 = vst [vmem:[%s170 + $0xd0] sm:$0xff] %v1571
      %1703 = vst.msk [vmem:[%s170 + $0xd8] sm:$0xff] %vm1676, %v1572
      %1704 = vst [vmem:[%s170 + $0xe0] sm:$0xff] %v1573
      %1705 = vst.msk [vmem:[%s170 + $0xe8] sm:$0xff] %vm1676, %v1574
      %1706 = vst [vmem:[%s170 + $0xf0] sm:$0xff] %v1575
      %1707 = vst.msk [vmem:[%s170 + $0xf8] sm:$0xff] %vm1676, %v1576
      %1708 = vst [vmem:[%s170 + $0x100] sm:$0xff] %v1577
      %1709 = vst.msk [vmem:[%s170 + $0x108] sm:$0xff] %vm1676, %v1578
      %1710 = vst [vmem:[%s170 + $0x110] sm:$0xff] %v1579
      %1711 = vst.msk [vmem:[%s170 + $0x118] sm:$0xff] %vm1676, %v1580
      %1712 = vst [vmem:[%s170 + $0x120] sm:$0xff] %v1581
      %1713 = vst.msk [vmem:[%s170 + $0x128] sm:$0xff] %vm1676, %v1582
      %1714 = vst [vmem:[%s170 + $0x130] sm:$0xff] %v1583
      %1715 = vst.msk [vmem:[%s170 + $0x138] sm:$0xff] %vm1676, %v1584
      %1716 = vst [vmem:[%s170 + $0x140] sm:$0xff] %v1585
      %1717 = vst.msk [vmem:[%s170 + $0x148] sm:$0xff] %vm1676, %v1586
      %1718 = vst [vmem:[%s170 + $0x150] sm:$0xff] %v1587
      %1719 = vst.msk [vmem:[%s170 + $0x158] sm:$0xff] %vm1676, %v1588
      %1720 = vst [vmem:[%s170 + $0x160] sm:$0xff] %v1589
      %1721 = vst.msk [vmem:[%s170 + $0x168] sm:$0xff] %vm1676, %v1590
      %1722 = vst [vmem:[%s170 + $0x170] sm:$0xff] %v1591
      %1723 = vst.msk [vmem:[%s170 + $0x178] sm:$0xff] %vm1676, %v1592
      %1724 = vst [vmem:[%s170 + $0x180] sm:$0xff] %v1593
      %1725 = vst.msk [vmem:[%s170 + $0x188] sm:$0xff] %vm1676, %v1594
      %1726 = vst [vmem:[%s170 + $0x190] sm:$0xff] %v1595
      %1727 = vst.msk [vmem:[%s170 + $0x198] sm:$0xff] %vm1676, %v1596
      %1728 = vst [vmem:[%s170 + $0x1a0] sm:$0xff] %v1597
      %1729 = vst.msk [vmem:[%s170 + $0x1a8] sm:$0xff] %vm1676, %v1598
      %1730 = vst [vmem:[%s170 + $0x1b0] sm:$0xff] %v1599
      %1731 = vst.msk [vmem:[%s170 + $0x1b8] sm:$0xff] %vm1676, %v1600
      %1732 = vst [vmem:[%s170 + $0x1c0] sm:$0xff] %v1601
      %1733 = vst.msk [vmem:[%s170 + $0x1c8] sm:$0xff] %vm1676, %v1602
      %1734 = vst [vmem:[%s170 + $0x1d0] sm:$0xff] %v1603
      %1735 = vst.msk [vmem:[%s170 + $0x1d8] sm:$0xff] %vm1676, %v1604
      %1736 = vst [vmem:[%s170 + $0x1e0] sm:$0xff] %v1605
      %1737 = vst.msk [vmem:[%s170 + $0x1e8] sm:$0xff] %vm1676, %v1606
      %1738 = vst [vmem:[%s170 + $0x1f0] sm:$0xff] %v1607
      %1739 = vst.msk [vmem:[%s170 + $0x1f8] sm:$0xff] %vm1676, %v1608
      %p1740 = scmp.lt.s32.totalorder %s14, 1
      %s1741 = scalar_select %p1740, %s14, 1
      %s1742 = smul.addr %s1741, 128
      %s1743 = smul.addr %s1742, 4
      %s1744 = scalar_lea.vmem %s3, %s1743
      // Predicated region
      $region33: #{_lambda_.1} parent=31 // pred_check
        %p1745 = pneg %p100
      $region34: #{_lambda_.1} parent=31 // pred_check_branch
        %1747 = sbr.rel (%p1745) target = $region36
      $region35: #{_lambda_.1} parent=31 // pred_region
        _
      $region36: #{_lambda_.1} parent=31 // pred_fallthru
        _
    $region32: #{_lambda_.1} parent=5 // pred_fallthru
      _
    %p1748 = scmp.le.s32.totalorder 2, %s9
    // Predicated region
    $region37: #{_lambda_.1} parent=5 // pred_check
      %p1749 = pneg %p1748
    $region38: #{_lambda_.1} parent=5 // pred_check_branch
      %1751 = sbr.rel (%p1749) target = $region40
    $region39: #{_lambda_.1} parent=5 // pred_region
      %s1752 = ssub.s32 %s9, 2
      // Predicated region
      $region41: #{_lambda_.1} parent=39 // pred_check
        %p1753 = pneg %p106
      $region42: #{_lambda_.1} parent=39 // pred_check_branch
        %1755 = sbr.rel (%p1753) target = $region44
      $region43: #{_lambda_.1} parent=39 // pred_region
        %p1756 = scmp.lt.s32.totalorder %s15, 1
        %s1757 = scalar_select %p1756, %s15, 1
        %s1758 = smul.addr %s1757, 128
        %s1759 = smul.addr %s1758, 4
        %s1760 = scalar_lea.vmem %s3, %s1759
      $region44: #{_lambda_.1} parent=39 // pred_fallthru
        _
    $region40: #{_lambda_.1} parent=5 // pred_fallthru
      _
  $region6: #{_lambda_.1} parent=0 // loop_footer
    %s13 = sadd.s32 1, %s9
  $region7: #{_lambda_.1} parent=0 // loop_footer_branch
    %8 = sbr.rel target = $region3
  $region8: #{_lambda_.1} parent=0 // loop_exit
    _

</llo_original>
